<compile_context>
chip_gen: v5e
topology: v5e:2x2
jax: 0.10.0
libtpu: 0.0.40
codegen_flags: <defaults>
</compile_context>

<pallas_src>
import functools

import jax
import jax.numpy as jnp
import numpy as np
from jax.experimental import pallas as pl
from jax.experimental.pallas import tpu as pltpu


# ------------------------------ fused kernel ---------------------------------
def _fused_lstm_kernel(x_ref, wih0_ref, b0_ref, wrec_ref, b1_ref, wfc_ref, bfc_ref,
                       out_ref, hn_ref, cn_ref, *, seq_len, bp, h):
    """Fused 2-layer LSTM + FC + sigmoid. Runs once (no grid); everything in VMEM.

    x_ref:    (T*BP, E)    time-major input, batch padded to BP sublanes
    wih0_ref: (E, 4H)      layer-0 W_ih^T, gate order [i,g,f,o], i/f/o cols prescaled 0.5
    b0_ref:   (1, 4H)      layer-0 bias (b_ih+b_hh), same packing
    wrec_ref: (2H, 2*4H)   fused recurrent RHS: rows[0:H]=[whh0|wih1], rows[H:2H]=[0|whh1]
    b1_ref:   (1, 4H)      layer-1 bias
    wfc_ref:  (2H, 128)    FC weight^T (rows[H:2H]=0 so replicated h doesn't double count)
    bfc_ref:  (1, 128)
    out_ref:  (BP, 128)    sigmoid(FC(h_T of layer 1)); class 0 lives in lane 0
    hn_ref/cn_ref: (2, BP, 2H)  final states, lane-replicated; real values in lanes [0,H)
    """
    G = 4 * h            # per-layer packed gate width (256 for H=64)
    H2 = 2 * h           # replicated-state width == one f32 vreg for H=64

    # Static lane masks, built once and reused across the unrolled time loop.
    lane2h = jax.lax.broadcasted_iota(jnp.int32, (bp, H2), 1)
    first_half = lane2h < h                            # lanes [0, h)
    laneG = jax.lax.broadcasted_iota(jnp.int32, (bp, G), 1)
    g_lane = (laneG >= h) & (laneG < 2 * h)            # the tanh (g) gate block

    # Layer-0 input projection for ALL timesteps in one MXU matmul (off the serial path).
    xproj = jnp.dot(x_ref[...], wih0_ref[...],
                    preferred_element_type=jnp.float32) + b0_ref[...]     # (T*BP, G)

    wrec = wrec_ref[...]                               # (2H, 2G)
    b1 = b1_ref[...]                                   # (1, G)

    def nonlin(pre):
        # i/f/o columns were pre-scaled by 0.5 at pack time, so sigmoid(x) ==
        # 0.5*tanh(x/2)+0.5 and the whole pre needs only ONE EUP tanh pass.
        t = jnp.tanh(pre)
        return jnp.where(g_lane, t, 0.5 * t + 0.5)

    def cell_update(gl, c_rep):
        # gl = [sig(i)|tanh(g)|sig(f)|sig(o)] (h lanes each). States are replicated
        # [v|v] across 2h lanes so every op below is a whole-vreg VPU op; the two
        # rolls ride the XLU slot.
        ig = gl[:, :H2]                                # [sig(i) | tanh(g)]
        fo = gl[:, H2:]                                # [sig(f) | sig(o)]
        ig_prod = ig * pltpu.roll(ig, shift=h, axis=1)       # [i*g | i*g]
        r = pltpu.roll(fo, shift=h, axis=1)                  # [sig(o) | sig(f)]
        f_rep = jnp.where(first_half, fo, r)                 # [f | f]
        o_rep = jnp.where(first_half, r, fo)                 # [o | o]
        c_new = f_rep * c_rep + ig_prod
        h_new = o_rep * jnp.tanh(c_new)
        return h_new, c_new

    zeros = jnp.zeros((bp, H2), jnp.float32)
    h0, c0, h1, c1 = zeros, zeros, zeros, zeros

    # Macro step 0: layer 0 only; h0 == 0 so the recurrent matmul is skipped entirely.
    h0, c0 = cell_update(nonlin(xproj[0:bp, :]), c0)

    # Interleaved recurrence: macro step s runs layer-0 step s and layer-1 step s-1
    # off ONE fused matmul -> serial chain ~T+1 instead of 2T.  Fully unrolled.
    for s in range(1, seq_len + 1):
        lhs = jnp.where(first_half, h0, h1)            # [h0 | h1] packed along K (1 vreg)
        rec = jnp.dot(lhs, wrec, preferred_element_type=jnp.float32)     # (bp, 2G)
        nh0, nc0 = h0, c0
        if s < seq_len:
            nh0, nc0 = cell_update(
                nonlin(rec[:, :G] + xproj[s * bp:(s + 1) * bp, :]), c0)
        nh1, nc1 = cell_update(nonlin(rec[:, G:] + b1), c1)
        h0, c0, h1, c1 = nh0, nc0, nh1, nc1

    hn_ref[0] = h0
    cn_ref[0] = c0
    hn_ref[1] = h1
    cn_ref[1] = c1

    # Head: FC + sigmoid on the final hidden state of the last layer only
    # (== output[:, -1] of the original module since n_class == 1).
    logits = jnp.dot(h1, wfc_ref[...],
                     preferred_element_type=jnp.float32) + bfc_ref[...]   # (BP, 128)
    out_ref[...] = jax.nn.sigmoid(logits)


# -------------------------- weight packing (one-time) --------------------------
def _pack_gates(w):
    """w: (4H, Din) torch layout, gate rows [i,f,g,o] -> (Din, 4H) cols [i,g,f,o],
    with i/f/o columns pre-scaled by 0.5 (sigmoid-as-tanh trick)."""
    four_h = w.shape[0]
    hh = four_h // 4
    wt = jnp.transpose(w).astype(jnp.float32)          # (Din, 4H)
    i_b = wt[:, 0 * hh:1 * hh] * 0.5
    f_b = wt[:, 1 * hh:2 * hh] * 0.5
    g_b = wt[:, 2 * hh:3 * hh]
    o_b = wt[:, 3 * hh:4 * hh] * 0.5
    return jnp.concatenate([i_b, g_b, f_b, o_b], axis=1)


def _pack_bias(b_ih, b_hh):
    b = (b_ih + b_hh).astype(jnp.float32)
    hh = b.shape[0] // 4
    i_b = b[0 * hh:1 * hh] * 0.5
    f_b = b[1 * hh:2 * hh] * 0.5
    g_b = b[2 * hh:3 * hh]
    o_b = b[3 * hh:4 * hh] * 0.5
    return jnp.concatenate([i_b, g_b, f_b, o_b]).reshape(1, 4 * hh)


def pack_lstm_params(params):
    """Pure function of params; call ONCE outside the jitted per-call path."""
    H = params["w_hh_l0"].shape[1]
    C = params["w_fc"].shape[0]
    CP = 128

    wih0 = _pack_gates(params["w_ih_l0"])                                  # (E, 4H)
    b0 = _pack_bias(params["b_ih_l0"], params["b_hh_l0"])                  # (1, 4H)
    whh0 = _pack_gates(params["w_hh_l0"])                                  # (H, 4H)
    wih1 = _pack_gates(params["w_ih_l1"])                                  # (H, 4H)
    whh1 = _pack_gates(params["w_hh_l1"])                                  # (H, 4H)
    b1 = _pack_bias(params["b_ih_l1"], params["b_hh_l1"])                  # (1, 4H)

    # Fused recurrent RHS: LHS is [h0 | h1] along K (2H lanes).
    top = jnp.concatenate([whh0, wih1], axis=1)                            # (H, 2*4H)
    bot = jnp.concatenate([jnp.zeros_like(whh1), whh1], axis=1)            # (H, 2*4H)
    wrec = jnp.concatenate([top, bot], axis=0)                             # (2H, 2*4H)

    wfc = jnp.zeros((2 * H, CP), jnp.float32).at[:H, :C].set(
        jnp.transpose(params["w_fc"]).astype(jnp.float32))                 # (2H, 128)
    bfc = jnp.zeros((1, CP), jnp.float32).at[0, :C].set(
        params["b_fc"].astype(jnp.float32))

    return dict(embedding=params["embedding"].astype(jnp.float32),
                wih0=wih0, b0=b0, wrec=wrec, b1=b1, wfc=wfc, bfc=bfc)


# --------------------------------- full model --------------------------------
@jax.jit
def lstm_forward(tokens, packed):
    """tokens: (B, T) int32 -> (output (B,), (h_n (2,B,H), c_n (2,B,H)))."""
    emb = jnp.take(packed["embedding"], tokens, axis=0)            # (B, T, E)
    B, T, E = emb.shape
    H2 = packed["wrec"].shape[0]                                   # 2H
    H = H2 // 2
    BP = ((B + 7) // 8) * 8                                        # sublane-pad batch

    # time-major, batch-padded, flattened to (T*BP, E) for the big input-proj matmul
    x = jnp.transpose(emb, (1, 0, 2))                              # (T, B, E)
    x = jnp.pad(x, ((0, 0), (0, BP - B), (0, 0)))                  # (T, BP, E)
    x = x.reshape(T * BP, E).astype(jnp.float32)

    kernel = functools.partial(_fused_lstm_kernel, seq_len=T, bp=BP, h=H)
    out_pad, hn_pad, cn_pad = pl.pallas_call(
        kernel,
        out_shape=(
            jax.ShapeDtypeStruct((BP, 128), jnp.float32),
            jax.ShapeDtypeStruct((2, BP, H2), jnp.float32),
            jax.ShapeDtypeStruct((2, BP, H2), jnp.float32),
        ),
        in_specs=[pl.BlockSpec(memory_space=pltpu.MemorySpace.VMEM)] * 7,
        out_specs=(pl.BlockSpec(memory_space=pltpu.MemorySpace.VMEM),) * 3,
    )(x, packed["wih0"], packed["b0"], packed["wrec"], packed["b1"],
      packed["wfc"], packed["bfc"])

    final = out_pad[:B, 0]                                         # (B,)  (n_class == 1)
    h_n = hn_pad[:, :B, :H]                                        # (2, B, H)
    c_n = cn_pad[:, :B, :H]
    return final, (h_n, c_n)


# -------------------------- pure-JAX reference model --------------------------
def reference_forward(tokens, params, n_layers=2):
    emb = jnp.take(params["embedding"], tokens, axis=0)
    B = emb.shape[0]
    x = emb
    hs, cs = [], []
    for layer in range(n_layers):
        w_ih = params[f"w_ih_l{layer}"]
        w_hh = params[f"w_hh_l{layer}"]
        b = params[f"b_ih_l{layer}"] + params[f"b_hh_l{layer}"]
        H = w_hh.shape[1]

        def step(carry, x_t):
            h, c = carry
            gates = x_t @ w_ih.T + h @ w_hh.T + b
            i, f, g, o = jnp.split(gates, 4, axis=-1)
            i, f, o = jax.nn.sigmoid(i), jax.nn.sigmoid(f), jax.nn.sigmoid(o)
            g = jnp.tanh(g)
            c = f * c + i * g
            h = o * jnp.tanh(c)
            return (h, c), h

        carry0 = (jnp.zeros((B, H), jnp.float32), jnp.zeros((B, H), jnp.float32))
        (h_n, c_n), ys = jax.lax.scan(step, carry0, jnp.transpose(x, (1, 0, 2)))
        x = jnp.transpose(ys, (1, 0, 2))
        hs.append(h_n)
        cs.append(c_n)
    flat = x.reshape(-1, x.shape[-1])
    probs = jax.nn.sigmoid(flat @ params["w_fc"].T + params["b_fc"])
    probs = probs.reshape(B, -1)
    return probs[:, -1], (jnp.stack(hs), jnp.stack(cs))


# ------------------------------------ main ------------------------------------
if __name__ == "__main__":
    # Module config: n_hidden=64, n_layers=2, n_class=1 (binary sentiment, BCELoss)
    n_vocab, n_embed = 50, 32
    n_hidden, n_layers = 64, 2
    n_class = 1
    B, T = 2, 8

    key = jax.random.PRNGKey(0)
    keys = jax.random.split(key, 16)
    k_lstm = 1.0 / (n_hidden ** 0.5)

    params = {}
    params["embedding"] = 0.1 * jax.random.normal(
        keys[0], (n_vocab, n_embed), jnp.float32)
    idx = 1
    for layer in range(n_layers):
        din = n_embed if layer == 0 else n_hidden
        params[f"w_ih_l{layer}"] = jax.random.uniform(
            keys[idx], (4 * n_hidden, din), jnp.float32, -k_lstm, k_lstm); idx += 1
        params[f"w_hh_l{layer}"] = jax.random.uniform(
            keys[idx], (4 * n_hidden, n_hidden), jnp.float32, -k_lstm, k_lstm); idx += 1
        params[f"b_ih_l{layer}"] = jax.random.uniform(
            keys[idx], (4 * n_hidden,), jnp.float32, -k_lstm, k_lstm); idx += 1
        params[f"b_hh_l{layer}"] = jax.random.uniform(
            keys[idx], (4 * n_hidden,), jnp.float32, -k_lstm, k_lstm); idx += 1
    params["w_fc"] = jax.random.uniform(
        keys[idx], (n_class, n_hidden), jnp.float32, -k_lstm, k_lstm); idx += 1
    params["b_fc"] = jax.random.uniform(
        keys[idx], (n_class,), jnp.float32, -k_lstm, k_lstm); idx += 1

    tokens = jax.random.randint(keys[idx], (B, T), 0, n_vocab, dtype=jnp.int32)

    packed = pack_lstm_params(params)          # one-time packing, outside the jitted path
    out, (h_n, c_n) = lstm_forward(tokens, packed)
    jax.block_until_ready((out, h_n, c_n))

    ref_out, (ref_h, ref_c) = reference_forward(tokens, params, n_layers)
    np.testing.assert_allclose(np.asarray(out), np.asarray(ref_out),
                               atol=2e-3, rtol=2e-3)
    np.testing.assert_allclose(np.asarray(h_n), np.asarray(ref_h),
                               atol=2e-3, rtol=2e-3)
    np.testing.assert_allclose(np.asarray(c_n), np.asarray(ref_c),
                               atol=2e-3, rtol=2e-3)

    print("KERNEL_OK")
</pallas_src>

<mosaic_0001>
module attributes {stable_mosaic.version = 11 : i64} {
  func.func @_fused_lstm_kernel(%arg0: memref<64x32xf32, #tpu.memory_space<vmem>>, %arg1: memref<32x256xf32, #tpu.memory_space<vmem>>, %arg2: memref<1x256xf32, #tpu.memory_space<vmem>>, %arg3: memref<128x512xf32, #tpu.memory_space<vmem>>, %arg4: memref<1x256xf32, #tpu.memory_space<vmem>>, %arg5: memref<128x128xf32, #tpu.memory_space<vmem>>, %arg6: memref<1x128xf32, #tpu.memory_space<vmem>>, %arg7: memref<8x128xf32, #tpu.memory_space<vmem>>, %arg8: memref<2x8x128xf32, #tpu.memory_space<vmem>>, %arg9: memref<2x8x128xf32, #tpu.memory_space<vmem>>) attributes {dimension_semantics = [], scalar_prefetch = 0 : i64, scratch_operands = 0 : i64, tpu.core_type = #tpu.core_type<tc>} {
    %0 = tpu.iota {dimensions = array<i32: 1>} : vector<8x128xi32>
    %c64_i32 = arith.constant 64 : i32
    %1 = vector.broadcast %c64_i32 : i32 to vector<8x128xi32>
    %2 = arith.cmpi slt, %0, %1 : vector<8x128xi32>
    %3 = tpu.iota {dimensions = array<i32: 1>} : vector<8x256xi32>
    %c64_i32_0 = arith.constant 64 : i32
    %4 = vector.broadcast %c64_i32_0 : i32 to vector<8x256xi32>
    %5 = arith.cmpi sge, %3, %4 : vector<8x256xi32>
    %c128_i32 = arith.constant 128 : i32
    %6 = vector.broadcast %c128_i32 : i32 to vector<8x256xi32>
    %7 = arith.cmpi slt, %3, %6 : vector<8x256xi32>
    %8 = arith.andi %5, %7 : vector<8x256xi1>
    %c0 = arith.constant 0 : index
    %c0_1 = arith.constant 0 : index
    %9 = vector.load %arg0[%c0, %c0_1] : memref<64x32xf32, #tpu.memory_space<vmem>>, vector<64x32xf32>
    %c0_2 = arith.constant 0 : index
    %c0_3 = arith.constant 0 : index
    %10 = vector.load %arg1[%c0_2, %c0_3] : memref<32x256xf32, #tpu.memory_space<vmem>>, vector<32x256xf32>
    %cst = arith.constant dense<0.000000e+00> : vector<64x256xf32>
    %11 = tpu.matmul %9, %10, %cst {dimension_numbers = #tpu.dot_dimension_numbers<[1], [0], [0], [1], [0, 0, 1, 1], [], []>} : vector<64x32xf32>, vector<32x256xf32>, vector<64x256xf32> -> vector<64x256xf32>
    %c0_4 = arith.constant 0 : index
    %c0_5 = arith.constant 0 : index
    %12 = vector.load %arg2[%c0_4, %c0_5] : memref<1x256xf32, #tpu.memory_space<vmem>>, vector<1x256xf32>
    %13 = vector.broadcast %12 : vector<1x256xf32> to vector<64x256xf32>
    %14 = arith.addf %11, %13 : vector<64x256xf32>
    %c0_6 = arith.constant 0 : index
    %c0_7 = arith.constant 0 : index
    %15 = vector.load %arg3[%c0_6, %c0_7] : memref<128x512xf32, #tpu.memory_space<vmem>>, vector<128x512xf32>
    %c0_8 = arith.constant 0 : index
    %c0_9 = arith.constant 0 : index
    %16 = vector.load %arg4[%c0_8, %c0_9] : memref<1x256xf32, #tpu.memory_space<vmem>>, vector<1x256xf32>
    %cst_10 = arith.constant 0.000000e+00 : f32
    %17 = vector.broadcast %cst_10 : f32 to vector<8x128xf32>
    %18 = vector.extract_strided_slice %14 {offsets = [0, 0], sizes = [8, 256], strides = [1, 1]} : vector<64x256xf32> to vector<8x256xf32>
    %19 = math.tanh %18 : vector<8x256xf32>
    %cst_11 = arith.constant 5.000000e-01 : f32
    %20 = vector.broadcast %cst_11 : f32 to vector<8x256xf32>
    %21 = arith.mulf %20, %19 : vector<8x256xf32>
    %cst_12 = arith.constant 5.000000e-01 : f32
    %22 = vector.broadcast %cst_12 : f32 to vector<8x256xf32>
    %23 = arith.addf %21, %22 : vector<8x256xf32>
    %24 = arith.select %8, %19, %23 : vector<8x256xi1>, vector<8x256xf32>
    %25 = vector.extract_strided_slice %24 {offsets = [0, 0], sizes = [8, 128], strides = [1, 1]} : vector<8x256xf32> to vector<8x128xf32>
    %26 = vector.extract_strided_slice %24 {offsets = [0, 128], sizes = [8, 128], strides = [1, 1]} : vector<8x256xf32> to vector<8x128xf32>
    %c64_i32_13 = arith.constant 64 : i32
    %27 = tpu.dynamic_rotate %25 by %c64_i32_13 dim 1 : vector<8x128xf32>, i32 -> vector<8x128xf32>
    %28 = arith.mulf %25, %27 : vector<8x128xf32>
    %c64_i32_14 = arith.constant 64 : i32
    %29 = tpu.dynamic_rotate %26 by %c64_i32_14 dim 1 : vector<8x128xf32>, i32 -> vector<8x128xf32>
    %30 = arith.select %2, %26, %29 : vector<8x128xi1>, vector<8x128xf32>
    %31 = arith.select %2, %29, %26 : vector<8x128xi1>, vector<8x128xf32>
    %32 = arith.mulf %30, %17 : vector<8x128xf32>
    %33 = arith.addf %32, %28 : vector<8x128xf32>
    %34 = math.tanh %33 : vector<8x128xf32>
    %35 = arith.mulf %31, %34 : vector<8x128xf32>
    %36 = arith.select %2, %35, %17 : vector<8x128xi1>, vector<8x128xf32>
    %cst_15 = arith.constant dense<0.000000e+00> : vector<8x512xf32>
    %37 = tpu.matmul %36, %15, %cst_15 {dimension_numbers = #tpu.dot_dimension_numbers<[1], [0], [0], [1], [0, 0, 1, 1], [], []>} : vector<8x128xf32>, vector<128x512xf32>, vector<8x512xf32> -> vector<8x512xf32>
    %38 = vector.extract_strided_slice %37 {offsets = [0, 0], sizes = [8, 256], strides = [1, 1]} : vector<8x512xf32> to vector<8x256xf32>
    %39 = vector.extract_strided_slice %14 {offsets = [8, 0], sizes = [8, 256], strides = [1, 1]} : vector<64x256xf32> to vector<8x256xf32>
    %40 = arith.addf %38, %39 : vector<8x256xf32>
    %41 = math.tanh %40 : vector<8x256xf32>
    %cst_16 = arith.constant 5.000000e-01 : f32
    %42 = vector.broadcast %cst_16 : f32 to vector<8x256xf32>
    %43 = arith.mulf %42, %41 : vector<8x256xf32>
    %cst_17 = arith.constant 5.000000e-01 : f32
    %44 = vector.broadcast %cst_17 : f32 to vector<8x256xf32>
    %45 = arith.addf %43, %44 : vector<8x256xf32>
    %46 = arith.select %8, %41, %45 : vector<8x256xi1>, vector<8x256xf32>
    %47 = vector.extract_strided_slice %46 {offsets = [0, 0], sizes = [8, 128], strides = [1, 1]} : vector<8x256xf32> to vector<8x128xf32>
    %48 = vector.extract_strided_slice %46 {offsets = [0, 128], sizes = [8, 128], strides = [1, 1]} : vector<8x256xf32> to vector<8x128xf32>
    %c64_i32_18 = arith.constant 64 : i32
    %49 = tpu.dynamic_rotate %47 by %c64_i32_18 dim 1 : vector<8x128xf32>, i32 -> vector<8x128xf32>
    %50 = arith.mulf %47, %49 : vector<8x128xf32>
    %c64_i32_19 = arith.constant 64 : i32
    %51 = tpu.dynamic_rotate %48 by %c64_i32_19 dim 1 : vector<8x128xf32>, i32 -> vector<8x128xf32>
    %52 = arith.select %2, %48, %51 : vector<8x128xi1>, vector<8x128xf32>
    %53 = arith.select %2, %51, %48 : vector<8x128xi1>, vector<8x128xf32>
    %54 = arith.mulf %52, %33 : vector<8x128xf32>
    %55 = arith.addf %54, %50 : vector<8x128xf32>
    %56 = math.tanh %55 : vector<8x128xf32>
    %57 = arith.mulf %53, %56 : vector<8x128xf32>
    %58 = vector.extract_strided_slice %37 {offsets = [0, 256], sizes = [8, 256], strides = [1, 1]} : vector<8x512xf32> to vector<8x256xf32>
    %59 = vector.broadcast %16 : vector<1x256xf32> to vector<8x256xf32>
    %60 = arith.addf %58, %59 : vector<8x256xf32>
    %61 = math.tanh %60 : vector<8x256xf32>
    %cst_20 = arith.constant 5.000000e-01 : f32
    %62 = vector.broadcast %cst_20 : f32 to vector<8x256xf32>
    %63 = arith.mulf %62, %61 : vector<8x256xf32>
    %cst_21 = arith.constant 5.000000e-01 : f32
    %64 = vector.broadcast %cst_21 : f32 to vector<8x256xf32>
    %65 = arith.addf %63, %64 : vector<8x256xf32>
    %66 = arith.select %8, %61, %65 : vector<8x256xi1>, vector<8x256xf32>
    %67 = vector.extract_strided_slice %66 {offsets = [0, 0], sizes = [8, 128], strides = [1, 1]} : vector<8x256xf32> to vector<8x128xf32>
    %68 = vector.extract_strided_slice %66 {offsets = [0, 128], sizes = [8, 128], strides = [1, 1]} : vector<8x256xf32> to vector<8x128xf32>
    %c64_i32_22 = arith.constant 64 : i32
    %69 = tpu.dynamic_rotate %67 by %c64_i32_22 dim 1 : vector<8x128xf32>, i32 -> vector<8x128xf32>
    %70 = arith.mulf %67, %69 : vector<8x128xf32>
    %c64_i32_23 = arith.constant 64 : i32
    %71 = tpu.dynamic_rotate %68 by %c64_i32_23 dim 1 : vector<8x128xf32>, i32 -> vector<8x128xf32>
    %72 = arith.select %2, %68, %71 : vector<8x128xi1>, vector<8x128xf32>
    %73 = arith.select %2, %71, %68 : vector<8x128xi1>, vector<8x128xf32>
    %74 = arith.mulf %72, %17 : vector<8x128xf32>
    %75 = arith.addf %74, %70 : vector<8x128xf32>
    %76 = math.tanh %75 : vector<8x128xf32>
    %77 = arith.mulf %73, %76 : vector<8x128xf32>
    %78 = arith.select %2, %57, %77 : vector<8x128xi1>, vector<8x128xf32>
    %cst_24 = arith.constant dense<0.000000e+00> : vector<8x512xf32>
    %79 = tpu.matmul %78, %15, %cst_24 {dimension_numbers = #tpu.dot_dimension_numbers<[1], [0], [0], [1], [0, 0, 1, 1], [], []>} : vector<8x128xf32>, vector<128x512xf32>, vector<8x512xf32> -> vector<8x512xf32>
    %80 = vector.extract_strided_slice %79 {offsets = [0, 0], sizes = [8, 256], strides = [1, 1]} : vector<8x512xf32> to vector<8x256xf32>
    %81 = vector.extract_strided_slice %14 {offsets = [16, 0], sizes = [8, 256], strides = [1, 1]} : vector<64x256xf32> to vector<8x256xf32>
    %82 = arith.addf %80, %81 : vector<8x256xf32>
    %83 = math.tanh %82 : vector<8x256xf32>
    %cst_25 = arith.constant 5.000000e-01 : f32
    %84 = vector.broadcast %cst_25 : f32 to vector<8x256xf32>
    %85 = arith.mulf %84, %83 : vector<8x256xf32>
    %cst_26 = arith.constant 5.000000e-01 : f32
    %86 = vector.broadcast %cst_26 : f32 to vector<8x256xf32>
    %87 = arith.addf %85, %86 : vector<8x256xf32>
    %88 = arith.select %8, %83, %87 : vector<8x256xi1>, vector<8x256xf32>
    %89 = vector.extract_strided_slice %88 {offsets = [0, 0], sizes = [8, 128], strides = [1, 1]} : vector<8x256xf32> to vector<8x128xf32>
    %90 = vector.extract_strided_slice %88 {offsets = [0, 128], sizes = [8, 128], strides = [1, 1]} : vector<8x256xf32> to vector<8x128xf32>
    %c64_i32_27 = arith.constant 64 : i32
    %91 = tpu.dynamic_rotate %89 by %c64_i32_27 dim 1 : vector<8x128xf32>, i32 -> vector<8x128xf32>
    %92 = arith.mulf %89, %91 : vector<8x128xf32>
    %c64_i32_28 = arith.constant 64 : i32
    %93 = tpu.dynamic_rotate %90 by %c64_i32_28 dim 1 : vector<8x128xf32>, i32 -> vector<8x128xf32>
    %94 = arith.select %2, %90, %93 : vector<8x128xi1>, vector<8x128xf32>
    %95 = arith.select %2, %93, %90 : vector<8x128xi1>, vector<8x128xf32>
    %96 = arith.mulf %94, %55 : vector<8x128xf32>
    %97 = arith.addf %96, %92 : vector<8x128xf32>
    %98 = math.tanh %97 : vector<8x128xf32>
    %99 = arith.mulf %95, %98 : vector<8x128xf32>
    %100 = vector.extract_strided_slice %79 {offsets = [0, 256], sizes = [8, 256], strides = [1, 1]} : vector<8x512xf32> to vector<8x256xf32>
    %101 = vector.broadcast %16 : vector<1x256xf32> to vector<8x256xf32>
    %102 = arith.addf %100, %101 : vector<8x256xf32>
    %103 = math.tanh %102 : vector<8x256xf32>
    %cst_29 = arith.constant 5.000000e-01 : f32
    %104 = vector.broadcast %cst_29 : f32 to vector<8x256xf32>
    %105 = arith.mulf %104, %103 : vector<8x256xf32>
    %cst_30 = arith.constant 5.000000e-01 : f32
    %106 = vector.broadcast %cst_30 : f32 to vector<8x256xf32>
    %107 = arith.addf %105, %106 : vector<8x256xf32>
    %108 = arith.select %8, %103, %107 : vector<8x256xi1>, vector<8x256xf32>
    %109 = vector.extract_strided_slice %108 {offsets = [0, 0], sizes = [8, 128], strides = [1, 1]} : vector<8x256xf32> to vector<8x128xf32>
    %110 = vector.extract_strided_slice %108 {offsets = [0, 128], sizes = [8, 128], strides = [1, 1]} : vector<8x256xf32> to vector<8x128xf32>
    %c64_i32_31 = arith.constant 64 : i32
    %111 = tpu.dynamic_rotate %109 by %c64_i32_31 dim 1 : vector<8x128xf32>, i32 -> vector<8x128xf32>
    %112 = arith.mulf %109, %111 : vector<8x128xf32>
    %c64_i32_32 = arith.constant 64 : i32
    %113 = tpu.dynamic_rotate %110 by %c64_i32_32 dim 1 : vector<8x128xf32>, i32 -> vector<8x128xf32>
    %114 = arith.select %2, %110, %113 : vector<8x128xi1>, vector<8x128xf32>
    %115 = arith.select %2, %113, %110 : vector<8x128xi1>, vector<8x128xf32>
    %116 = arith.mulf %114, %75 : vector<8x128xf32>
    %117 = arith.addf %116, %112 : vector<8x128xf32>
    %118 = math.tanh %117 : vector<8x128xf32>
    %119 = arith.mulf %115, %118 : vector<8x128xf32>
    %120 = arith.select %2, %99, %119 : vector<8x128xi1>, vector<8x128xf32>
    %cst_33 = arith.constant dense<0.000000e+00> : vector<8x512xf32>
    %121 = tpu.matmul %120, %15, %cst_33 {dimension_numbers = #tpu.dot_dimension_numbers<[1], [0], [0], [1], [0, 0, 1, 1], [], []>} : vector<8x128xf32>, vector<128x512xf32>, vector<8x512xf32> -> vector<8x512xf32>
    %122 = vector.extract_strided_slice %121 {offsets = [0, 0], sizes = [8, 256], strides = [1, 1]} : vector<8x512xf32> to vector<8x256xf32>
    %123 = vector.extract_strided_slice %14 {offsets = [24, 0], sizes = [8, 256], strides = [1, 1]} : vector<64x256xf32> to vector<8x256xf32>
    %124 = arith.addf %122, %123 : vector<8x256xf32>
    %125 = math.tanh %124 : vector<8x256xf32>
    %cst_34 = arith.constant 5.000000e-01 : f32
    %126 = vector.broadcast %cst_34 : f32 to vector<8x256xf32>
    %127 = arith.mulf %126, %125 : vector<8x256xf32>
    %cst_35 = arith.constant 5.000000e-01 : f32
    %128 = vector.broadcast %cst_35 : f32 to vector<8x256xf32>
    %129 = arith.addf %127, %128 : vector<8x256xf32>
    %130 = arith.select %8, %125, %129 : vector<8x256xi1>, vector<8x256xf32>
    %131 = vector.extract_strided_slice %130 {offsets = [0, 0], sizes = [8, 128], strides = [1, 1]} : vector<8x256xf32> to vector<8x128xf32>
    %132 = vector.extract_strided_slice %130 {offsets = [0, 128], sizes = [8, 128], strides = [1, 1]} : vector<8x256xf32> to vector<8x128xf32>
    %c64_i32_36 = arith.constant 64 : i32
    %133 = tpu.dynamic_rotate %131 by %c64_i32_36 dim 1 : vector<8x128xf32>, i32 -> vector<8x128xf32>
    %134 = arith.mulf %131, %133 : vector<8x128xf32>
    %c64_i32_37 = arith.constant 64 : i32
    %135 = tpu.dynamic_rotate %132 by %c64_i32_37 dim 1 : vector<8x128xf32>, i32 -> vector<8x128xf32>
    %136 = arith.select %2, %132, %135 : vector<8x128xi1>, vector<8x128xf32>
    %137 = arith.select %2, %135, %132 : vector<8x128xi1>, vector<8x128xf32>
    %138 = arith.mulf %136, %97 : vector<8x128xf32>
    %139 = arith.addf %138, %134 : vector<8x128xf32>
    %140 = math.tanh %139 : vector<8x128xf32>
    %141 = arith.mulf %137, %140 : vector<8x128xf32>
    %142 = vector.extract_strided_slice %121 {offsets = [0, 256], sizes = [8, 256], strides = [1, 1]} : vector<8x512xf32> to vector<8x256xf32>
    %143 = vector.broadcast %16 : vector<1x256xf32> to vector<8x256xf32>
    %144 = arith.addf %142, %143 : vector<8x256xf32>
    %145 = math.tanh %144 : vector<8x256xf32>
    %cst_38 = arith.constant 5.000000e-01 : f32
    %146 = vector.broadcast %cst_38 : f32 to vector<8x256xf32>
    %147 = arith.mulf %146, %145 : vector<8x256xf32>
    %cst_39 = arith.constant 5.000000e-01 : f32
    %148 = vector.broadcast %cst_39 : f32 to vector<8x256xf32>
    %149 = arith.addf %147, %148 : vector<8x256xf32>
    %150 = arith.select %8, %145, %149 : vector<8x256xi1>, vector<8x256xf32>
    %151 = vector.extract_strided_slice %150 {offsets = [0, 0], sizes = [8, 128], strides = [1, 1]} : vector<8x256xf32> to vector<8x128xf32>
    %152 = vector.extract_strided_slice %150 {offsets = [0, 128], sizes = [8, 128], strides = [1, 1]} : vector<8x256xf32> to vector<8x128xf32>
    %c64_i32_40 = arith.constant 64 : i32
    %153 = tpu.dynamic_rotate %151 by %c64_i32_40 dim 1 : vector<8x128xf32>, i32 -> vector<8x128xf32>
    %154 = arith.mulf %151, %153 : vector<8x128xf32>
    %c64_i32_41 = arith.constant 64 : i32
    %155 = tpu.dynamic_rotate %152 by %c64_i32_41 dim 1 : vector<8x128xf32>, i32 -> vector<8x128xf32>
    %156 = arith.select %2, %152, %155 : vector<8x128xi1>, vector<8x128xf32>
    %157 = arith.select %2, %155, %152 : vector<8x128xi1>, vector<8x128xf32>
    %158 = arith.mulf %156, %117 : vector<8x128xf32>
    %159 = arith.addf %158, %154 : vector<8x128xf32>
    %160 = math.tanh %159 : vector<8x128xf32>
    %161 = arith.mulf %157, %160 : vector<8x128xf32>
    %162 = arith.select %2, %141, %161 : vector<8x128xi1>, vector<8x128xf32>
    %cst_42 = arith.constant dense<0.000000e+00> : vector<8x512xf32>
    %163 = tpu.matmul %162, %15, %cst_42 {dimension_numbers = #tpu.dot_dimension_numbers<[1], [0], [0], [1], [0, 0, 1, 1], [], []>} : vector<8x128xf32>, vector<128x512xf32>, vector<8x512xf32> -> vector<8x512xf32>
    %164 = vector.extract_strided_slice %163 {offsets = [0, 0], sizes = [8, 256], strides = [1, 1]} : vector<8x512xf32> to vector<8x256xf32>
    %165 = vector.extract_strided_slice %14 {offsets = [32, 0], sizes = [8, 256], strides = [1, 1]} : vector<64x256xf32> to vector<8x256xf32>
    %166 = arith.addf %164, %165 : vector<8x256xf32>
    %167 = math.tanh %166 : vector<8x256xf32>
    %cst_43 = arith.constant 5.000000e-01 : f32
    %168 = vector.broadcast %cst_43 : f32 to vector<8x256xf32>
    %169 = arith.mulf %168, %167 : vector<8x256xf32>
    %cst_44 = arith.constant 5.000000e-01 : f32
    %170 = vector.broadcast %cst_44 : f32 to vector<8x256xf32>
    %171 = arith.addf %169, %170 : vector<8x256xf32>
    %172 = arith.select %8, %167, %171 : vector<8x256xi1>, vector<8x256xf32>
    %173 = vector.extract_strided_slice %172 {offsets = [0, 0], sizes = [8, 128], strides = [1, 1]} : vector<8x256xf32> to vector<8x128xf32>
    %174 = vector.extract_strided_slice %172 {offsets = [0, 128], sizes = [8, 128], strides = [1, 1]} : vector<8x256xf32> to vector<8x128xf32>
    %c64_i32_45 = arith.constant 64 : i32
    %175 = tpu.dynamic_rotate %173 by %c64_i32_45 dim 1 : vector<8x128xf32>, i32 -> vector<8x128xf32>
    %176 = arith.mulf %173, %175 : vector<8x128xf32>
    %c64_i32_46 = arith.constant 64 : i32
    %177 = tpu.dynamic_rotate %174 by %c64_i32_46 dim 1 : vector<8x128xf32>, i32 -> vector<8x128xf32>
    %178 = arith.select %2, %174, %177 : vector<8x128xi1>, vector<8x128xf32>
    %179 = arith.select %2, %177, %174 : vector<8x128xi1>, vector<8x128xf32>
    %180 = arith.mulf %178, %139 : vector<8x128xf32>
    %181 = arith.addf %180, %176 : vector<8x128xf32>
    %182 = math.tanh %181 : vector<8x128xf32>
    %183 = arith.mulf %179, %182 : vector<8x128xf32>
    %184 = vector.extract_strided_slice %163 {offsets = [0, 256], sizes = [8, 256], strides = [1, 1]} : vector<8x512xf32> to vector<8x256xf32>
    %185 = vector.broadcast %16 : vector<1x256xf32> to vector<8x256xf32>
    %186 = arith.addf %184, %185 : vector<8x256xf32>
    %187 = math.tanh %186 : vector<8x256xf32>
    %cst_47 = arith.constant 5.000000e-01 : f32
    %188 = vector.broadcast %cst_47 : f32 to vector<8x256xf32>
    %189 = arith.mulf %188, %187 : vector<8x256xf32>
    %cst_48 = arith.constant 5.000000e-01 : f32
    %190 = vector.broadcast %cst_48 : f32 to vector<8x256xf32>
    %191 = arith.addf %189, %190 : vector<8x256xf32>
    %192 = arith.select %8, %187, %191 : vector<8x256xi1>, vector<8x256xf32>
    %193 = vector.extract_strided_slice %192 {offsets = [0, 0], sizes = [8, 128], strides = [1, 1]} : vector<8x256xf32> to vector<8x128xf32>
    %194 = vector.extract_strided_slice %192 {offsets = [0, 128], sizes = [8, 128], strides = [1, 1]} : vector<8x256xf32> to vector<8x128xf32>
    %c64_i32_49 = arith.constant 64 : i32
    %195 = tpu.dynamic_rotate %193 by %c64_i32_49 dim 1 : vector<8x128xf32>, i32 -> vector<8x128xf32>
    %196 = arith.mulf %193, %195 : vector<8x128xf32>
    %c64_i32_50 = arith.constant 64 : i32
    %197 = tpu.dynamic_rotate %194 by %c64_i32_50 dim 1 : vector<8x128xf32>, i32 -> vector<8x128xf32>
    %198 = arith.select %2, %194, %197 : vector<8x128xi1>, vector<8x128xf32>
    %199 = arith.select %2, %197, %194 : vector<8x128xi1>, vector<8x128xf32>
    %200 = arith.mulf %198, %159 : vector<8x128xf32>
    %201 = arith.addf %200, %196 : vector<8x128xf32>
    %202 = math.tanh %201 : vector<8x128xf32>
    %203 = arith.mulf %199, %202 : vector<8x128xf32>
    %204 = arith.select %2, %183, %203 : vector<8x128xi1>, vector<8x128xf32>
    %cst_51 = arith.constant dense<0.000000e+00> : vector<8x512xf32>
    %205 = tpu.matmul %204, %15, %cst_51 {dimension_numbers = #tpu.dot_dimension_numbers<[1], [0], [0], [1], [0, 0, 1, 1], [], []>} : vector<8x128xf32>, vector<128x512xf32>, vector<8x512xf32> -> vector<8x512xf32>
    %206 = vector.extract_strided_slice %205 {offsets = [0, 0], sizes = [8, 256], strides = [1, 1]} : vector<8x512xf32> to vector<8x256xf32>
    %207 = vector.extract_strided_slice %14 {offsets = [40, 0], sizes = [8, 256], strides = [1, 1]} : vector<64x256xf32> to vector<8x256xf32>
    %208 = arith.addf %206, %207 : vector<8x256xf32>
    %209 = math.tanh %208 : vector<8x256xf32>
    %cst_52 = arith.constant 5.000000e-01 : f32
    %210 = vector.broadcast %cst_52 : f32 to vector<8x256xf32>
    %211 = arith.mulf %210, %209 : vector<8x256xf32>
    %cst_53 = arith.constant 5.000000e-01 : f32
    %212 = vector.broadcast %cst_53 : f32 to vector<8x256xf32>
    %213 = arith.addf %211, %212 : vector<8x256xf32>
    %214 = arith.select %8, %209, %213 : vector<8x256xi1>, vector<8x256xf32>
    %215 = vector.extract_strided_slice %214 {offsets = [0, 0], sizes = [8, 128], strides = [1, 1]} : vector<8x256xf32> to vector<8x128xf32>
    %216 = vector.extract_strided_slice %214 {offsets = [0, 128], sizes = [8, 128], strides = [1, 1]} : vector<8x256xf32> to vector<8x128xf32>
    %c64_i32_54 = arith.constant 64 : i32
    %217 = tpu.dynamic_rotate %215 by %c64_i32_54 dim 1 : vector<8x128xf32>, i32 -> vector<8x128xf32>
    %218 = arith.mulf %215, %217 : vector<8x128xf32>
    %c64_i32_55 = arith.constant 64 : i32
    %219 = tpu.dynamic_rotate %216 by %c64_i32_55 dim 1 : vector<8x128xf32>, i32 -> vector<8x128xf32>
    %220 = arith.select %2, %216, %219 : vector<8x128xi1>, vector<8x128xf32>
    %221 = arith.select %2, %219, %216 : vector<8x128xi1>, vector<8x128xf32>
    %222 = arith.mulf %220, %181 : vector<8x128xf32>
    %223 = arith.addf %222, %218 : vector<8x128xf32>
    %224 = math.tanh %223 : vector<8x128xf32>
    %225 = arith.mulf %221, %224 : vector<8x128xf32>
    %226 = vector.extract_strided_slice %205 {offsets = [0, 256], sizes = [8, 256], strides = [1, 1]} : vector<8x512xf32> to vector<8x256xf32>
    %227 = vector.broadcast %16 : vector<1x256xf32> to vector<8x256xf32>
    %228 = arith.addf %226, %227 : vector<8x256xf32>
    %229 = math.tanh %228 : vector<8x256xf32>
    %cst_56 = arith.constant 5.000000e-01 : f32
    %230 = vector.broadcast %cst_56 : f32 to vector<8x256xf32>
    %231 = arith.mulf %230, %229 : vector<8x256xf32>
    %cst_57 = arith.constant 5.000000e-01 : f32
    %232 = vector.broadcast %cst_57 : f32 to vector<8x256xf32>
    %233 = arith.addf %231, %232 : vector<8x256xf32>
    %234 = arith.select %8, %229, %233 : vector<8x256xi1>, vector<8x256xf32>
    %235 = vector.extract_strided_slice %234 {offsets = [0, 0], sizes = [8, 128], strides = [1, 1]} : vector<8x256xf32> to vector<8x128xf32>
    %236 = vector.extract_strided_slice %234 {offsets = [0, 128], sizes = [8, 128], strides = [1, 1]} : vector<8x256xf32> to vector<8x128xf32>
    %c64_i32_58 = arith.constant 64 : i32
    %237 = tpu.dynamic_rotate %235 by %c64_i32_58 dim 1 : vector<8x128xf32>, i32 -> vector<8x128xf32>
    %238 = arith.mulf %235, %237 : vector<8x128xf32>
    %c64_i32_59 = arith.constant 64 : i32
    %239 = tpu.dynamic_rotate %236 by %c64_i32_59 dim 1 : vector<8x128xf32>, i32 -> vector<8x128xf32>
    %240 = arith.select %2, %236, %239 : vector<8x128xi1>, vector<8x128xf32>
    %241 = arith.select %2, %239, %236 : vector<8x128xi1>, vector<8x128xf32>
    %242 = arith.mulf %240, %201 : vector<8x128xf32>
    %243 = arith.addf %242, %238 : vector<8x128xf32>
    %244 = math.tanh %243 : vector<8x128xf32>
    %245 = arith.mulf %241, %244 : vector<8x128xf32>
    %246 = arith.select %2, %225, %245 : vector<8x128xi1>, vector<8x128xf32>
    %cst_60 = arith.constant dense<0.000000e+00> : vector<8x512xf32>
    %247 = tpu.matmul %246, %15, %cst_60 {dimension_numbers = #tpu.dot_dimension_numbers<[1], [0], [0], [1], [0, 0, 1, 1], [], []>} : vector<8x128xf32>, vector<128x512xf32>, vector<8x512xf32> -> vector<8x512xf32>
    %248 = vector.extract_strided_slice %247 {offsets = [0, 0], sizes = [8, 256], strides = [1, 1]} : vector<8x512xf32> to vector<8x256xf32>
    %249 = vector.extract_strided_slice %14 {offsets = [48, 0], sizes = [8, 256], strides = [1, 1]} : vector<64x256xf32> to vector<8x256xf32>
    %250 = arith.addf %248, %249 : vector<8x256xf32>
    %251 = math.tanh %250 : vector<8x256xf32>
    %cst_61 = arith.constant 5.000000e-01 : f32
    %252 = vector.broadcast %cst_61 : f32 to vector<8x256xf32>
    %253 = arith.mulf %252, %251 : vector<8x256xf32>
    %cst_62 = arith.constant 5.000000e-01 : f32
    %254 = vector.broadcast %cst_62 : f32 to vector<8x256xf32>
    %255 = arith.addf %253, %254 : vector<8x256xf32>
    %256 = arith.select %8, %251, %255 : vector<8x256xi1>, vector<8x256xf32>
    %257 = vector.extract_strided_slice %256 {offsets = [0, 0], sizes = [8, 128], strides = [1, 1]} : vector<8x256xf32> to vector<8x128xf32>
    %258 = vector.extract_strided_slice %256 {offsets = [0, 128], sizes = [8, 128], strides = [1, 1]} : vector<8x256xf32> to vector<8x128xf32>
    %c64_i32_63 = arith.constant 64 : i32
    %259 = tpu.dynamic_rotate %257 by %c64_i32_63 dim 1 : vector<8x128xf32>, i32 -> vector<8x128xf32>
    %260 = arith.mulf %257, %259 : vector<8x128xf32>
    %c64_i32_64 = arith.constant 64 : i32
    %261 = tpu.dynamic_rotate %258 by %c64_i32_64 dim 1 : vector<8x128xf32>, i32 -> vector<8x128xf32>
    %262 = arith.select %2, %258, %261 : vector<8x128xi1>, vector<8x128xf32>
    %263 = arith.select %2, %261, %258 : vector<8x128xi1>, vector<8x128xf32>
    %264 = arith.mulf %262, %223 : vector<8x128xf32>
    %265 = arith.addf %264, %260 : vector<8x128xf32>
    %266 = math.tanh %265 : vector<8x128xf32>
    %267 = arith.mulf %263, %266 : vector<8x128xf32>
    %268 = vector.extract_strided_slice %247 {offsets = [0, 256], sizes = [8, 256], strides = [1, 1]} : vector<8x512xf32> to vector<8x256xf32>
    %269 = vector.broadcast %16 : vector<1x256xf32> to vector<8x256xf32>
    %270 = arith.addf %268, %269 : vector<8x256xf32>
    %271 = math.tanh %270 : vector<8x256xf32>
    %cst_65 = arith.constant 5.000000e-01 : f32
    %272 = vector.broadcast %cst_65 : f32 to vector<8x256xf32>
    %273 = arith.mulf %272, %271 : vector<8x256xf32>
    %cst_66 = arith.constant 5.000000e-01 : f32
    %274 = vector.broadcast %cst_66 : f32 to vector<8x256xf32>
    %275 = arith.addf %273, %274 : vector<8x256xf32>
    %276 = arith.select %8, %271, %275 : vector<8x256xi1>, vector<8x256xf32>
    %277 = vector.extract_strided_slice %276 {offsets = [0, 0], sizes = [8, 128], strides = [1, 1]} : vector<8x256xf32> to vector<8x128xf32>
    %278 = vector.extract_strided_slice %276 {offsets = [0, 128], sizes = [8, 128], strides = [1, 1]} : vector<8x256xf32> to vector<8x128xf32>
    %c64_i32_67 = arith.constant 64 : i32
    %279 = tpu.dynamic_rotate %277 by %c64_i32_67 dim 1 : vector<8x128xf32>, i32 -> vector<8x128xf32>
    %280 = arith.mulf %277, %279 : vector<8x128xf32>
    %c64_i32_68 = arith.constant 64 : i32
    %281 = tpu.dynamic_rotate %278 by %c64_i32_68 dim 1 : vector<8x128xf32>, i32 -> vector<8x128xf32>
    %282 = arith.select %2, %278, %281 : vector<8x128xi1>, vector<8x128xf32>
    %283 = arith.select %2, %281, %278 : vector<8x128xi1>, vector<8x128xf32>
    %284 = arith.mulf %282, %243 : vector<8x128xf32>
    %285 = arith.addf %284, %280 : vector<8x128xf32>
    %286 = math.tanh %285 : vector<8x128xf32>
    %287 = arith.mulf %283, %286 : vector<8x128xf32>
    %288 = arith.select %2, %267, %287 : vector<8x128xi1>, vector<8x128xf32>
    %cst_69 = arith.constant dense<0.000000e+00> : vector<8x512xf32>
    %289 = tpu.matmul %288, %15, %cst_69 {dimension_numbers = #tpu.dot_dimension_numbers<[1], [0], [0], [1], [0, 0, 1, 1], [], []>} : vector<8x128xf32>, vector<128x512xf32>, vector<8x512xf32> -> vector<8x512xf32>
    %290 = vector.extract_strided_slice %289 {offsets = [0, 0], sizes = [8, 256], strides = [1, 1]} : vector<8x512xf32> to vector<8x256xf32>
    %291 = vector.extract_strided_slice %14 {offsets = [56, 0], sizes = [8, 256], strides = [1, 1]} : vector<64x256xf32> to vector<8x256xf32>
    %292 = arith.addf %290, %291 : vector<8x256xf32>
    %293 = math.tanh %292 : vector<8x256xf32>
    %cst_70 = arith.constant 5.000000e-01 : f32
    %294 = vector.broadcast %cst_70 : f32 to vector<8x256xf32>
    %295 = arith.mulf %294, %293 : vector<8x256xf32>
    %cst_71 = arith.constant 5.000000e-01 : f32
    %296 = vector.broadcast %cst_71 : f32 to vector<8x256xf32>
    %297 = arith.addf %295, %296 : vector<8x256xf32>
    %298 = arith.select %8, %293, %297 : vector<8x256xi1>, vector<8x256xf32>
    %299 = vector.extract_strided_slice %298 {offsets = [0, 0], sizes = [8, 128], strides = [1, 1]} : vector<8x256xf32> to vector<8x128xf32>
    %300 = vector.extract_strided_slice %298 {offsets = [0, 128], sizes = [8, 128], strides = [1, 1]} : vector<8x256xf32> to vector<8x128xf32>
    %c64_i32_72 = arith.constant 64 : i32
    %301 = tpu.dynamic_rotate %299 by %c64_i32_72 dim 1 : vector<8x128xf32>, i32 -> vector<8x128xf32>
    %302 = arith.mulf %299, %301 : vector<8x128xf32>
    %c64_i32_73 = arith.constant 64 : i32
    %303 = tpu.dynamic_rotate %300 by %c64_i32_73 dim 1 : vector<8x128xf32>, i32 -> vector<8x128xf32>
    %304 = arith.select %2, %300, %303 : vector<8x128xi1>, vector<8x128xf32>
    %305 = arith.select %2, %303, %300 : vector<8x128xi1>, vector<8x128xf32>
    %306 = arith.mulf %304, %265 : vector<8x128xf32>
    %307 = arith.addf %306, %302 : vector<8x128xf32>
    %308 = math.tanh %307 : vector<8x128xf32>
    %309 = arith.mulf %305, %308 : vector<8x128xf32>
    %310 = vector.extract_strided_slice %289 {offsets = [0, 256], sizes = [8, 256], strides = [1, 1]} : vector<8x512xf32> to vector<8x256xf32>
    %311 = vector.broadcast %16 : vector<1x256xf32> to vector<8x256xf32>
    %312 = arith.addf %310, %311 : vector<8x256xf32>
    %313 = math.tanh %312 : vector<8x256xf32>
    %cst_74 = arith.constant 5.000000e-01 : f32
    %314 = vector.broadcast %cst_74 : f32 to vector<8x256xf32>
    %315 = arith.mulf %314, %313 : vector<8x256xf32>
    %cst_75 = arith.constant 5.000000e-01 : f32
    %316 = vector.broadcast %cst_75 : f32 to vector<8x256xf32>
    %317 = arith.addf %315, %316 : vector<8x256xf32>
    %318 = arith.select %8, %313, %317 : vector<8x256xi1>, vector<8x256xf32>
    %319 = vector.extract_strided_slice %318 {offsets = [0, 0], sizes = [8, 128], strides = [1, 1]} : vector<8x256xf32> to vector<8x128xf32>
    %320 = vector.extract_strided_slice %318 {offsets = [0, 128], sizes = [8, 128], strides = [1, 1]} : vector<8x256xf32> to vector<8x128xf32>
    %c64_i32_76 = arith.constant 64 : i32
    %321 = tpu.dynamic_rotate %319 by %c64_i32_76 dim 1 : vector<8x128xf32>, i32 -> vector<8x128xf32>
    %322 = arith.mulf %319, %321 : vector<8x128xf32>
    %c64_i32_77 = arith.constant 64 : i32
    %323 = tpu.dynamic_rotate %320 by %c64_i32_77 dim 1 : vector<8x128xf32>, i32 -> vector<8x128xf32>
    %324 = arith.select %2, %320, %323 : vector<8x128xi1>, vector<8x128xf32>
    %325 = arith.select %2, %323, %320 : vector<8x128xi1>, vector<8x128xf32>
    %326 = arith.mulf %324, %285 : vector<8x128xf32>
    %327 = arith.addf %326, %322 : vector<8x128xf32>
    %328 = math.tanh %327 : vector<8x128xf32>
    %329 = arith.mulf %325, %328 : vector<8x128xf32>
    %330 = arith.select %2, %309, %329 : vector<8x128xi1>, vector<8x128xf32>
    %cst_78 = arith.constant dense<0.000000e+00> : vector<8x512xf32>
    %331 = tpu.matmul %330, %15, %cst_78 {dimension_numbers = #tpu.dot_dimension_numbers<[1], [0], [0], [1], [0, 0, 1, 1], [], []>} : vector<8x128xf32>, vector<128x512xf32>, vector<8x512xf32> -> vector<8x512xf32>
    %332 = vector.extract_strided_slice %331 {offsets = [0, 256], sizes = [8, 256], strides = [1, 1]} : vector<8x512xf32> to vector<8x256xf32>
    %333 = vector.broadcast %16 : vector<1x256xf32> to vector<8x256xf32>
    %334 = arith.addf %332, %333 : vector<8x256xf32>
    %335 = math.tanh %334 : vector<8x256xf32>
    %cst_79 = arith.constant 5.000000e-01 : f32
    %336 = vector.broadcast %cst_79 : f32 to vector<8x256xf32>
    %337 = arith.mulf %336, %335 : vector<8x256xf32>
    %cst_80 = arith.constant 5.000000e-01 : f32
    %338 = vector.broadcast %cst_80 : f32 to vector<8x256xf32>
    %339 = arith.addf %337, %338 : vector<8x256xf32>
    %340 = arith.select %8, %335, %339 : vector<8x256xi1>, vector<8x256xf32>
    %341 = vector.extract_strided_slice %340 {offsets = [0, 0], sizes = [8, 128], strides = [1, 1]} : vector<8x256xf32> to vector<8x128xf32>
    %342 = vector.extract_strided_slice %340 {offsets = [0, 128], sizes = [8, 128], strides = [1, 1]} : vector<8x256xf32> to vector<8x128xf32>
    %c64_i32_81 = arith.constant 64 : i32
    %343 = tpu.dynamic_rotate %341 by %c64_i32_81 dim 1 : vector<8x128xf32>, i32 -> vector<8x128xf32>
    %344 = arith.mulf %341, %343 : vector<8x128xf32>
    %c64_i32_82 = arith.constant 64 : i32
    %345 = tpu.dynamic_rotate %342 by %c64_i32_82 dim 1 : vector<8x128xf32>, i32 -> vector<8x128xf32>
    %346 = arith.select %2, %342, %345 : vector<8x128xi1>, vector<8x128xf32>
    %347 = arith.select %2, %345, %342 : vector<8x128xi1>, vector<8x128xf32>
    %348 = arith.mulf %346, %327 : vector<8x128xf32>
    %349 = arith.addf %348, %344 : vector<8x128xf32>
    %350 = math.tanh %349 : vector<8x128xf32>
    %351 = arith.mulf %347, %350 : vector<8x128xf32>
    %c0_83 = arith.constant 0 : index
    %c0_84 = arith.constant 0 : index
    %c0_85 = arith.constant 0 : index
    %352 = vector.load %arg8[%c0_83, %c0_84, %c0_85] : memref<2x8x128xf32, #tpu.memory_space<vmem>>, vector<1x8x128xf32>
    %353 = vector.shape_cast %352 : vector<1x8x128xf32> to vector<8x128xf32>
    %354 = vector.shape_cast %309 : vector<8x128xf32> to vector<1x8x128xf32>
    tpu.vector_store %arg8[%c0_83, %c0_84, %c0_85], %354 {strides = array<i32>} : memref<2x8x128xf32, #tpu.memory_space<vmem>>, vector<1x8x128xf32>,
    %c0_86 = arith.constant 0 : index
    %c0_87 = arith.constant 0 : index
    %c0_88 = arith.constant 0 : index
    %355 = vector.load %arg9[%c0_86, %c0_87, %c0_88] : memref<2x8x128xf32, #tpu.memory_space<vmem>>, vector<1x8x128xf32>
    %356 = vector.shape_cast %355 : vector<1x8x128xf32> to vector<8x128xf32>
    %357 = vector.shape_cast %307 : vector<8x128xf32> to vector<1x8x128xf32>
    tpu.vector_store %arg9[%c0_86, %c0_87, %c0_88], %357 {strides = array<i32>} : memref<2x8x128xf32, #tpu.memory_space<vmem>>, vector<1x8x128xf32>,
    %c1 = arith.constant 1 : index
    %c0_89 = arith.constant 0 : index
    %c0_90 = arith.constant 0 : index
    %358 = vector.load %arg8[%c1, %c0_89, %c0_90] : memref<2x8x128xf32, #tpu.memory_space<vmem>>, vector<1x8x128xf32>
    %359 = vector.shape_cast %358 : vector<1x8x128xf32> to vector<8x128xf32>
    %360 = vector.shape_cast %351 : vector<8x128xf32> to vector<1x8x128xf32>
    tpu.vector_store %arg8[%c1, %c0_89, %c0_90], %360 {strides = array<i32>} : memref<2x8x128xf32, #tpu.memory_space<vmem>>, vector<1x8x128xf32>,
    %c1_91 = arith.constant 1 : index
    %c0_92 = arith.constant 0 : index
    %c0_93 = arith.constant 0 : index
    %361 = vector.load %arg9[%c1_91, %c0_92, %c0_93] : memref<2x8x128xf32, #tpu.memory_space<vmem>>, vector<1x8x128xf32>
    %362 = vector.shape_cast %361 : vector<1x8x128xf32> to vector<8x128xf32>
    %363 = vector.shape_cast %349 : vector<8x128xf32> to vector<1x8x128xf32>
    tpu.vector_store %arg9[%c1_91, %c0_92, %c0_93], %363 {strides = array<i32>} : memref<2x8x128xf32, #tpu.memory_space<vmem>>, vector<1x8x128xf32>,
    %c0_94 = arith.constant 0 : index
    %c0_95 = arith.constant 0 : index
    %364 = vector.load %arg5[%c0_94, %c0_95] : memref<128x128xf32, #tpu.memory_space<vmem>>, vector<128x128xf32>
    %cst_96 = arith.constant dense<0.000000e+00> : vector<8x128xf32>
    %365 = tpu.matmul %351, %364, %cst_96 {dimension_numbers = #tpu.dot_dimension_numbers<[1], [0], [0], [1], [0, 0, 1, 1], [], []>} : vector<8x128xf32>, vector<128x128xf32>, vector<8x128xf32> -> vector<8x128xf32>
    %c0_97 = arith.constant 0 : index
    %c0_98 = arith.constant 0 : index
    %366 = vector.load %arg6[%c0_97, %c0_98] : memref<1x128xf32, #tpu.memory_space<vmem>>, vector<1x128xf32>
    %367 = vector.broadcast %366 : vector<1x128xf32> to vector<8x128xf32>
    %368 = arith.addf %365, %367 : vector<8x128xf32>
    %369 = arith.negf %368 : vector<8x128xf32>
    %370 = math.exp %369 : vector<8x128xf32>
    %cst_99 = arith.constant 1.000000e+00 : f32
    %371 = vector.broadcast %cst_99 : f32 to vector<8x128xf32>
    %372 = arith.addf %371, %370 : vector<8x128xf32>
    %373 = arith.divf %371, %372 : vector<8x128xf32>
    %c0_100 = arith.constant 0 : index
    %c0_101 = arith.constant 0 : index
    %374 = vector.load %arg7[%c0_100, %c0_101] : memref<8x128xf32, #tpu.memory_space<vmem>>, vector<8x128xf32>
    tpu.vector_store %arg7[%c0_100, %c0_101], %373 {strides = array<i32>} : memref<8x128xf32, #tpu.memory_space<vmem>>, vector<8x128xf32>,
    return
  }
}

</mosaic_0001>

<llo_original>
// kernel: lstm_forward.1
$region0: #{lstm_forward.1}
  #allocation0 [shape = 'u32[]', space=smem, size = 0x4, offset = 0x4, fixed_abs, tag = 'smem constant byte address 0x4 - core index']
  #allocation1 [shape = 'u32[72,128]{1,0:T(1,128)}', space=vmem, size = 0x9000, scoped, tag = 'internal scratch']
  %s0 = inlined_call_operand.vmem [shape: f32[64,32], index: 0, kind: input, shape index: {}]
  %s1 = inlined_call_operand.vmem [shape: f32[32,256], index: 1, kind: input, shape index: {}]
  %s2 = inlined_call_operand.vmem [shape: f32[1,256], index: 2, kind: input, shape index: {}]
  %s3 = inlined_call_operand.hbm [shape: f32[128,512], index: 3, kind: input, shape index: {}]
  %s4 = inlined_call_operand.vmem [shape: f32[1,256], index: 4, kind: input, shape index: {}]
  %s5 = inlined_call_operand.vmem [shape: f32[128,128], index: 5, kind: input, shape index: {}]
  %s6 = inlined_call_operand.vmem [shape: f32[1,128], index: 6, kind: input, shape index: {}]
  %s7 = inlined_call_operand.vmem [shape: f32[8,128], index: 7, kind: output, shape index: {0}]
  %s8 = inlined_call_operand.vmem [shape: f32[2,8,128], index: 8, kind: output, shape index: {1}]
  %s9 = inlined_call_operand.vmem [shape: f32[2,8,128], index: 9, kind: output, shape index: {2}]
  %10 = xla_tuple %s7, %s8, %s9
  %s11 = sld [smem:[#allocation0]]
  $region58: #{lstm_forward.1} parent=0
    _
  %s13 = ssub.s32 1, %s11
  %s14 = scalar_select 0, %s13, %s11
  $region1: #{lstm_forward.1} parent=0
    #allocation2 [shape = 'u8[262144]{0}', space=vmem, size = 0x40000, scoped, tag = 'input window, operand 3, single buffered']
    #allocation3 [shape = 's32[1]{0}', space=sflag, size = 0x4, scoped, tag = 'scoped memory for lstm_forward.1']
    %15 = vsyncpa [#allocation3], 0
    // Predicated region
    $region2: #{lstm_forward.1} parent=1 // pred_check
      _
    $region3: #{lstm_forward.1} parent=1 // pred_check_branch
      %17 = sbr.rel (0) target = $region5
    $region4: #{lstm_forward.1} parent=1 // pred_region
      _
    $region5: #{lstm_forward.1} parent=1 // pred_fallthru
      _
    // Predicated region
    $region6: #{lstm_forward.1} parent=1 // pred_check
      _
    $region7: #{lstm_forward.1} parent=1 // pred_check_branch
      %19 = sbr.rel (0) target = $region9
    $region8: #{lstm_forward.1} parent=1 // pred_region
      _
    $region9: #{lstm_forward.1} parent=1 // pred_fallthru
      _
    // Predicated region
    $region10: #{lstm_forward.1} parent=1 // pred_check
      _
    $region11: #{lstm_forward.1} parent=1 // pred_check_branch
      %21 = sbr.rel (0) target = $region13
    $region12: #{lstm_forward.1} parent=1 // pred_region
      _
    $region13: #{lstm_forward.1} parent=1 // pred_fallthru
      _
    // Predicated region
    $region14: #{lstm_forward.1} parent=1 // pred_check
      _
    $region15: #{lstm_forward.1} parent=1 // pred_check_branch
      %23 = sbr.rel (0) target = $region17
    $region16: #{lstm_forward.1} parent=1 // pred_region
      %25 = vsyncadd [#allocation3], 0
      %s26 = sshll.u32 %s3, 4
      %s27 = int_to_ptr.hbm [resolvable:$true] %s26
      %s28 = sshll.u32 [#allocation2], 4
      %s29 = int_to_ptr.vmem [resolvable:$true] %s28
      %34 = dma.hbm_to_vmem [thread:$0]  %s27, 8192, %s29, [#allocation3], 512, 512, 32
    $region17: #{lstm_forward.1} parent=1 // pred_fallthru
      _
    // Predicated region
    $region18: #{lstm_forward.1} parent=1 // pred_check
      _
    $region19: #{lstm_forward.1} parent=1 // pred_check_branch
      %36 = sbr.rel (0) target = $region21
    $region20: #{lstm_forward.1} parent=1 // pred_region
      _
    $region21: #{lstm_forward.1} parent=1 // pred_fallthru
      _
    // Predicated region
    $region22: #{lstm_forward.1} parent=1 // pred_check
      _
    $region23: #{lstm_forward.1} parent=1 // pred_check_branch
      %38 = sbr.rel (0) target = $region25
    $region24: #{lstm_forward.1} parent=1 // pred_region
      _
    $region25: #{lstm_forward.1} parent=1 // pred_fallthru
      _
    // Predicated region
    $region26: #{lstm_forward.1} parent=1 // pred_check
      _
    $region27: #{lstm_forward.1} parent=1 // pred_check_branch
      %40 = sbr.rel (0) target = $region29
    $region28: #{lstm_forward.1} parent=1 // pred_region
      _
    $region29: #{lstm_forward.1} parent=1 // pred_fallthru
      _
    // Predicated region
    $region30: #{lstm_forward.1} parent=1 // pred_check
      _
    $region31: #{lstm_forward.1} parent=1 // pred_check_branch
      %42 = sbr.rel (0) target = $region33
    $region32: #{lstm_forward.1} parent=1 // pred_region
      %44 = dma.done [#allocation3], 8192
    $region33: #{lstm_forward.1} parent=1 // pred_fallthru
      _
    %v45 = vlaneseq
    %v46 = vand.u32 %v45, 127
    %vm47 = vcmp.lt.s32.totalorder %v46, 64
    %v48 = vadd.s32 %v46, 128
    %vm49 = vcmp.ge.s32.totalorder %v46, 64
    %vm50 = vcmp.ge.s32.totalorder %v48, 64
    %vm51 = vcmp.lt.s32.totalorder %v46, 128
    %vm52 = vcmp.lt.s32.totalorder %v48, 128
    %vm53 = vmand %vm49, %vm51
    %vm54 = vmand %vm50, %vm52
    %v55 = vld [vmem:[%s0] sm:$0xff]
    %v56 = vld [vmem:[%s0 + $0x8] sm:$0xff]
    %v57 = vld [vmem:[%s0 + $0x10] sm:$0xff]
    %v58 = vld [vmem:[%s0 + $0x18] sm:$0xff]
    %v59 = vld [vmem:[%s0 + $0x20] sm:$0xff]
    %v60 = vld [vmem:[%s0 + $0x28] sm:$0xff]
    %v61 = vld [vmem:[%s0 + $0x30] sm:$0xff]
    %v62 = vld [vmem:[%s0 + $0x38] sm:$0xff]
    %v63 = vld [vmem:[%s1] sm:$0xff]
    %v64 = vld [vmem:[%s1 + $0x8] sm:$0xff]
    %v65 = vld [vmem:[%s1 + $0x10] sm:$0xff]
    %v66 = vld [vmem:[%s1 + $0x18] sm:$0xff]
    %v67 = vld [vmem:[%s1 + $0x20] sm:$0xff]
    %v68 = vld [vmem:[%s1 + $0x28] sm:$0xff]
    %v69 = vld [vmem:[%s1 + $0x30] sm:$0xff]
    %v70 = vld [vmem:[%s1 + $0x38] sm:$0xff]
    %v71 = vld [vmem:[%s2] sm:$0x3]
    %v73 = vperm.slane %v71, 0
    %v74 = vperm.slane %v71, 1
    %vm77 = vcmask 261120
    %v79 = vsel %vm77, %v55, 0
    %v82 = vsel %vm77, %v56, 0
    %v85 = vsel %vm77, %v57, 0
    %v88 = vsel %vm77, %v58, 0
    %v91 = vsel %vm77, %v59, 0
    %v94 = vsel %vm77, %v60, 0
    %v97 = vsel %vm77, %v61, 0
    %v100 = vsel %vm77, %v62, 0
    %102 = vmatpush.msra.mxu0 0.0
    %103 = vmatpush.msra.mxu0 0.0
    %104 = vmatpush.msra.mxu0 0.0
    %105 = vmatpush.msra.mxu0 0.0
    %106 = vmatpush.msra.mxu0 0.0
    %107 = vmatpush.msra.mxu0 0.0
    %108 = vmatpush.msra.mxu0 0.0
    %109 = vmatpush.msra.mxu0 0.0
    %110 = vmatpush.msra.mxu0 0.0
    %111 = vmatpush.msra.mxu0 0.0
    %112 = vmatpush.msra.mxu0 0.0
    %113 = vmatpush.msra.mxu0 0.0
    %114 = vmatpush.msra.mxu0 %v69
    %115 = vmatpush.msra.mxu0 %v67
    %116 = vmatpush.msra.mxu0 %v65
    %117 = vmatpush.msra.mxu0 %v63
    %118 = vmatmul.f32.gmra.mxu0 %v79
    %v119 = vpop.f32.mrf.mxu0
    %v120 = vadd.f32 %v73, %v119
    %121 = vmatmul.f32.gmra.mxu0 %v82
    %v122 = vpop.f32.mrf.mxu0
    %v123 = vadd.f32 %v73, %v122
    %124 = vmatmul.f32.gmra.mxu0 %v85
    %v125 = vpop.f32.mrf.mxu0
    %v126 = vadd.f32 %v73, %v125
    %127 = vmatmul.f32.gmra.mxu0 %v88
    %v128 = vpop.f32.mrf.mxu0
    %v129 = vadd.f32 %v73, %v128
    %130 = vmatmul.f32.gmra.mxu0 %v91
    %v131 = vpop.f32.mrf.mxu0
    %v132 = vadd.f32 %v73, %v131
    %133 = vmatmul.f32.gmra.mxu0 %v94
    %v134 = vpop.f32.mrf.mxu0
    %v135 = vadd.f32 %v73, %v134
    %136 = vmatmul.f32.gmra.mxu0 %v97
    %v137 = vpop.f32.mrf.mxu0
    %v138 = vadd.f32 %v73, %v137
    %139 = vmatmul.f32.gmra.mxu0 %v100
    %v140 = vpop.f32.mrf.mxu0
    %v141 = vadd.f32 %v73, %v140
    %142 = vdwg.mxu0
    %143 = vmatpush.msra.mxu0 0.0
    %144 = vmatpush.msra.mxu0 0.0
    %145 = vmatpush.msra.mxu0 0.0
    %146 = vmatpush.msra.mxu0 0.0
    %147 = vmatpush.msra.mxu0 0.0
    %148 = vmatpush.msra.mxu0 0.0
    %149 = vmatpush.msra.mxu0 0.0
    %150 = vmatpush.msra.mxu0 0.0
    %151 = vmatpush.msra.mxu0 0.0
    %152 = vmatpush.msra.mxu0 0.0
    %153 = vmatpush.msra.mxu0 0.0
    %154 = vmatpush.msra.mxu0 0.0
    %155 = vmatpush.msra.mxu0 %v70
    %156 = vmatpush.msra.mxu0 %v68
    %157 = vmatpush.msra.mxu0 %v66
    %158 = vmatpush.msra.mxu0 %v64
    %159 = vmatmul.f32.gmra.mxu0 %v79
    %v160 = vpop.f32.mrf.mxu0
    %v161 = vadd.f32 %v74, %v160
    %162 = vmatmul.f32.gmra.mxu0 %v82
    %v163 = vpop.f32.mrf.mxu0
    %v164 = vadd.f32 %v74, %v163
    %165 = vmatmul.f32.gmra.mxu0 %v85
    %v166 = vpop.f32.mrf.mxu0
    %v167 = vadd.f32 %v74, %v166
    %168 = vmatmul.f32.gmra.mxu0 %v88
    %v169 = vpop.f32.mrf.mxu0
    %v170 = vadd.f32 %v74, %v169
    %171 = vmatmul.f32.gmra.mxu0 %v91
    %v172 = vpop.f32.mrf.mxu0
    %v173 = vadd.f32 %v74, %v172
    %174 = vmatmul.f32.gmra.mxu0 %v94
    %v175 = vpop.f32.mrf.mxu0
    %v176 = vadd.f32 %v74, %v175
    %177 = vmatmul.f32.gmra.mxu0 %v97
    %v178 = vpop.f32.mrf.mxu0
    %v179 = vadd.f32 %v74, %v178
    %180 = vmatmul.f32.gmra.mxu0 %v100
    %v181 = vpop.f32.mrf.mxu0
    %v182 = vadd.f32 %v74, %v181
    %183 = vdwg.mxu0
    %v184 = vld [vmem:[#allocation2] sm:$0xff]
    %v185 = vld [vmem:[#allocation2 + $0x8] sm:$0xff]
    %v186 = vld [vmem:[#allocation2 + $0x10] sm:$0xff]
    %v187 = vld [vmem:[#allocation2 + $0x18] sm:$0xff]
    %v188 = vld [vmem:[#allocation2 + $0x20] sm:$0xff]
    %v189 = vld [vmem:[#allocation2 + $0x28] sm:$0xff]
    %v190 = vld [vmem:[#allocation2 + $0x30] sm:$0xff]
    %v191 = vld [vmem:[#allocation2 + $0x38] sm:$0xff]
    %v192 = vld [vmem:[#allocation2 + $0x40] sm:$0xff]
    %v193 = vld [vmem:[#allocation2 + $0x48] sm:$0xff]
    %v194 = vld [vmem:[#allocation2 + $0x50] sm:$0xff]
    %v195 = vld [vmem:[#allocation2 + $0x58] sm:$0xff]
    %v196 = vld [vmem:[#allocation2 + $0x60] sm:$0xff]
    %v197 = vld [vmem:[#allocation2 + $0x68] sm:$0xff]
    %v198 = vld [vmem:[#allocation2 + $0x70] sm:$0xff]
    %v199 = vld [vmem:[#allocation2 + $0x78] sm:$0xff]
    %v200 = vld [vmem:[#allocation2 + $0x80] sm:$0xff]
    %v201 = vld [vmem:[#allocation2 + $0x88] sm:$0xff]
    %v202 = vld [vmem:[#allocation2 + $0x90] sm:$0xff]
    %v203 = vld [vmem:[#allocation2 + $0x98] sm:$0xff]
    %v204 = vld [vmem:[#allocation2 + $0xa0] sm:$0xff]
    %v205 = vld [vmem:[#allocation2 + $0xa8] sm:$0xff]
    %v206 = vld [vmem:[#allocation2 + $0xb0] sm:$0xff]
    %v207 = vld [vmem:[#allocation2 + $0xb8] sm:$0xff]
    %v208 = vld [vmem:[#allocation2 + $0xc0] sm:$0xff]
    %v209 = vld [vmem:[#allocation2 + $0xc8] sm:$0xff]
    %v210 = vld [vmem:[#allocation2 + $0xd0] sm:$0xff]
    %v211 = vld [vmem:[#allocation2 + $0xd8] sm:$0xff]
    %v212 = vld [vmem:[#allocation2 + $0xe0] sm:$0xff]
    %v213 = vld [vmem:[#allocation2 + $0xe8] sm:$0xff]
    %v214 = vld [vmem:[#allocation2 + $0xf0] sm:$0xff]
    %v215 = vld [vmem:[#allocation2 + $0xf8] sm:$0xff]
    %v216 = vld [vmem:[#allocation2 + $0x100] sm:$0xff]
    %v217 = vld [vmem:[#allocation2 + $0x108] sm:$0xff]
    %v218 = vld [vmem:[#allocation2 + $0x110] sm:$0xff]
    %v219 = vld [vmem:[#allocation2 + $0x118] sm:$0xff]
    %v220 = vld [vmem:[#allocation2 + $0x120] sm:$0xff]
    %v221 = vld [vmem:[#allocation2 + $0x128] sm:$0xff]
    %v222 = vld [vmem:[#allocation2 + $0x130] sm:$0xff]
    %v223 = vld [vmem:[#allocation2 + $0x138] sm:$0xff]
    %v224 = vld [vmem:[#allocation2 + $0x140] sm:$0xff]
    %v225 = vld [vmem:[#allocation2 + $0x148] sm:$0xff]
    %v226 = vld [vmem:[#allocation2 + $0x150] sm:$0xff]
    %v227 = vld [vmem:[#allocation2 + $0x158] sm:$0xff]
    %v228 = vld [vmem:[#allocation2 + $0x160] sm:$0xff]
    %v229 = vld [vmem:[#allocation2 + $0x168] sm:$0xff]
    %v230 = vld [vmem:[#allocation2 + $0x170] sm:$0xff]
    %v231 = vld [vmem:[#allocation2 + $0x178] sm:$0xff]
    %v232 = vld [vmem:[#allocation2 + $0x180] sm:$0xff]
    %v233 = vld [vmem:[#allocation2 + $0x188] sm:$0xff]
    %v234 = vld [vmem:[#allocation2 + $0x190] sm:$0xff]
    %v235 = vld [vmem:[#allocation2 + $0x198] sm:$0xff]
    %v236 = vld [vmem:[#allocation2 + $0x1a0] sm:$0xff]
    %v237 = vld [vmem:[#allocation2 + $0x1a8] sm:$0xff]
    %v238 = vld [vmem:[#allocation2 + $0x1b0] sm:$0xff]
    %v239 = vld [vmem:[#allocation2 + $0x1b8] sm:$0xff]
    %v240 = vld [vmem:[#allocation2 + $0x1c0] sm:$0xff]
    %v241 = vld [vmem:[#allocation2 + $0x1c8] sm:$0xff]
    %v242 = vld [vmem:[#allocation2 + $0x1d0] sm:$0xff]
    %v243 = vld [vmem:[#allocation2 + $0x1d8] sm:$0xff]
    %v244 = vld [vmem:[#allocation2 + $0x1e0] sm:$0xff]
    %v245 = vld [vmem:[#allocation2 + $0x1e8] sm:$0xff]
    %v246 = vld [vmem:[#allocation2 + $0x1f0] sm:$0xff]
    %v247 = vld [vmem:[#allocation2 + $0x1f8] sm:$0xff]
    %v248 = vld [vmem:[%s4] sm:$0x3]
    %v249 = vtanh.pop %v120
    %v250 = vtanh.pop %v161
    %v251 = vmul.f32 %v249, 0.5
    %v252 = vmul.f32 %v250, 0.5
    %v253 = vadd.f32 %v251, 0.5
    %v254 = vadd.f32 %v252, 0.5
    %v255 = vsel %vm53, %v249, %v253
    %v256 = vsel %vm54, %v250, %v254
    %257 = vrot.lane.b32.xlu0 %v255, 64
    %v258 = vpop.permute.xlu0 %257
    %v259 = vmul.f32 %v255, %v258
    %260 = vrot.lane.b32.xlu0 %v256, 64
    %v261 = vpop.permute.xlu0 %260
    %v262 = vsel %vm47, %v256, %v261
    %v263 = vsel %vm47, %v261, %v256
    %v264 = vmul.f32 %v262, 0.0
    %v265 = vadd.f32 %v264, %v259
    %v266 = vtanh.pop %v265
    %v267 = vmul.f32 %v263, %v266
    %v268 = vsel %vm47, %v267, 0.0
    %269 = vmatpush.msra.mxu0 %v244
    %270 = vmatpush.msra.mxu0 %v240
    %271 = vmatpush.msra.mxu0 %v236
    %272 = vmatpush.msra.mxu0 %v232
    %273 = vmatpush.msra.mxu0 %v228
    %274 = vmatpush.msra.mxu0 %v224
    %275 = vmatpush.msra.mxu0 %v220
    %276 = vmatpush.msra.mxu0 %v216
    %277 = vmatpush.msra.mxu0 %v212
    %278 = vmatpush.msra.mxu0 %v208
    %279 = vmatpush.msra.mxu0 %v204
    %280 = vmatpush.msra.mxu0 %v200
    %281 = vmatpush.msra.mxu0 %v196
    %282 = vmatpush.msra.mxu0 %v192
    %283 = vmatpush.msra.mxu0 %v188
    %284 = vmatpush.msra.mxu0 %v184
    %285 = vmatmul.f32.gmra.mxu0 %v268
    %v286 = vpop.f32.mrf.mxu0
    %v287 = vadd.f32 0.0, %v286
    %288 = vdwg.mxu0
    %289 = vmatpush.msra.mxu0 %v245
    %290 = vmatpush.msra.mxu0 %v241
    %291 = vmatpush.msra.mxu0 %v237
    %292 = vmatpush.msra.mxu0 %v233
    %293 = vmatpush.msra.mxu0 %v229
    %294 = vmatpush.msra.mxu0 %v225
    %295 = vmatpush.msra.mxu0 %v221
    %296 = vmatpush.msra.mxu0 %v217
    %297 = vmatpush.msra.mxu0 %v213
    %298 = vmatpush.msra.mxu0 %v209
    %299 = vmatpush.msra.mxu0 %v205
    %300 = vmatpush.msra.mxu0 %v201
    %301 = vmatpush.msra.mxu0 %v197
    %302 = vmatpush.msra.mxu0 %v193
    %303 = vmatpush.msra.mxu0 %v189
    %304 = vmatpush.msra.mxu0 %v185
    %305 = vmatmul.f32.gmra.mxu0 %v268
    %v306 = vpop.f32.mrf.mxu0
    %v307 = vadd.f32 0.0, %v306
    %308 = vdwg.mxu0
    %309 = vmatpush.msra.mxu0 %v246
    %310 = vmatpush.msra.mxu0 %v242
    %311 = vmatpush.msra.mxu0 %v238
    %312 = vmatpush.msra.mxu0 %v234
    %313 = vmatpush.msra.mxu0 %v230
    %314 = vmatpush.msra.mxu0 %v226
    %315 = vmatpush.msra.mxu0 %v222
    %316 = vmatpush.msra.mxu0 %v218
    %317 = vmatpush.msra.mxu0 %v214
    %318 = vmatpush.msra.mxu0 %v210
    %319 = vmatpush.msra.mxu0 %v206
    %320 = vmatpush.msra.mxu0 %v202
    %321 = vmatpush.msra.mxu0 %v198
    %322 = vmatpush.msra.mxu0 %v194
    %323 = vmatpush.msra.mxu0 %v190
    %324 = vmatpush.msra.mxu0 %v186
    %325 = vmatmul.f32.gmra.mxu0 %v268
    %v326 = vpop.f32.mrf.mxu0
    %v327 = vadd.f32 0.0, %v326
    %328 = vdwg.mxu0
    %329 = vmatpush.msra.mxu0 %v247
    %330 = vmatpush.msra.mxu0 %v243
    %331 = vmatpush.msra.mxu0 %v239
    %332 = vmatpush.msra.mxu0 %v235
    %333 = vmatpush.msra.mxu0 %v231
    %334 = vmatpush.msra.mxu0 %v227
    %335 = vmatpush.msra.mxu0 %v223
    %336 = vmatpush.msra.mxu0 %v219
    %337 = vmatpush.msra.mxu0 %v215
    %338 = vmatpush.msra.mxu0 %v211
    %339 = vmatpush.msra.mxu0 %v207
    %340 = vmatpush.msra.mxu0 %v203
    %341 = vmatpush.msra.mxu0 %v199
    %342 = vmatpush.msra.mxu0 %v195
    %343 = vmatpush.msra.mxu0 %v191
    %344 = vmatpush.msra.mxu0 %v187
    %345 = vmatmul.f32.gmra.mxu0 %v268
    %v346 = vpop.f32.mrf.mxu0
    %v347 = vadd.f32 0.0, %v346
    %348 = vdwg.mxu0
    %v349 = vadd.f32 %v287, %v123
    %v350 = vadd.f32 %v307, %v164
    %v351 = vtanh.pop %v349
    %v352 = vtanh.pop %v350
    %v353 = vmul.f32 %v351, 0.5
    %v354 = vmul.f32 %v352, 0.5
    %v355 = vadd.f32 %v353, 0.5
    %v356 = vadd.f32 %v354, 0.5
    %v357 = vsel %vm53, %v351, %v355
    %v358 = vsel %vm54, %v352, %v356
    %359 = vrot.lane.b32.xlu0 %v357, 64
    %v360 = vpop.permute.xlu0 %359
    %v361 = vmul.f32 %v357, %v360
    %362 = vrot.lane.b32.xlu0 %v358, 64
    %v363 = vpop.permute.xlu0 %362
    %v364 = vsel %vm47, %v358, %v363
    %v365 = vsel %vm47, %v363, %v358
    %v366 = vmul.f32 %v364, %v265
    %v367 = vadd.f32 %v366, %v361
    %v368 = vtanh.pop %v367
    %v369 = vmul.f32 %v365, %v368
    %v371 = vperm.slane %v248, 0
    %v372 = vperm.slane %v248, 1
    %v375 = vadd.f32 %v327, %v371
    %v376 = vadd.f32 %v347, %v372
    %v377 = vtanh.pop %v375
    %v378 = vtanh.pop %v376
    %v379 = vmul.f32 %v377, 0.5
    %v380 = vmul.f32 %v378, 0.5
    %v381 = vadd.f32 %v379, 0.5
    %v382 = vadd.f32 %v380, 0.5
    %v383 = vsel %vm53, %v377, %v381
    %v384 = vsel %vm54, %v378, %v382
    %385 = vrot.lane.b32.xlu0 %v383, 64
    %v386 = vpop.permute.xlu0 %385
    %v387 = vmul.f32 %v383, %v386
    %388 = vrot.lane.b32.xlu0 %v384, 64
    %v389 = vpop.permute.xlu0 %388
    %v390 = vsel %vm47, %v384, %v389
    %v391 = vsel %vm47, %v389, %v384
    %v392 = vmul.f32 %v390, 0.0
    %v393 = vadd.f32 %v392, %v387
    %v394 = vtanh.pop %v393
    %v395 = vmul.f32 %v391, %v394
    %v396 = vsel %vm47, %v369, %v395
    %397 = vmatpush.msra.mxu0 %v244
    %398 = vmatpush.msra.mxu0 %v240
    %399 = vmatpush.msra.mxu0 %v236
    %400 = vmatpush.msra.mxu0 %v232
    %401 = vmatpush.msra.mxu0 %v228
    %402 = vmatpush.msra.mxu0 %v224
    %403 = vmatpush.msra.mxu0 %v220
    %404 = vmatpush.msra.mxu0 %v216
    %405 = vmatpush.msra.mxu0 %v212
    %406 = vmatpush.msra.mxu0 %v208
    %407 = vmatpush.msra.mxu0 %v204
    %408 = vmatpush.msra.mxu0 %v200
    %409 = vmatpush.msra.mxu0 %v196
    %410 = vmatpush.msra.mxu0 %v192
    %411 = vmatpush.msra.mxu0 %v188
    %412 = vmatpush.msra.mxu0 %v184
    %413 = vmatmul.f32.gmra.mxu0 %v396
    %v414 = vpop.f32.mrf.mxu0
    %v415 = vadd.f32 0.0, %v414
    %416 = vdwg.mxu0
    %417 = vmatpush.msra.mxu0 %v245
    %418 = vmatpush.msra.mxu0 %v241
    %419 = vmatpush.msra.mxu0 %v237
    %420 = vmatpush.msra.mxu0 %v233
    %421 = vmatpush.msra.mxu0 %v229
    %422 = vmatpush.msra.mxu0 %v225
    %423 = vmatpush.msra.mxu0 %v221
    %424 = vmatpush.msra.mxu0 %v217
    %425 = vmatpush.msra.mxu0 %v213
    %426 = vmatpush.msra.mxu0 %v209
    %427 = vmatpush.msra.mxu0 %v205
    %428 = vmatpush.msra.mxu0 %v201
    %429 = vmatpush.msra.mxu0 %v197
    %430 = vmatpush.msra.mxu0 %v193
    %431 = vmatpush.msra.mxu0 %v189
    %432 = vmatpush.msra.mxu0 %v185
    %433 = vmatmul.f32.gmra.mxu0 %v396
    %v434 = vpop.f32.mrf.mxu0
    %v435 = vadd.f32 0.0, %v434
    %436 = vdwg.mxu0
    %437 = vmatpush.msra.mxu0 %v246
    %438 = vmatpush.msra.mxu0 %v242
    %439 = vmatpush.msra.mxu0 %v238
    %440 = vmatpush.msra.mxu0 %v234
    %441 = vmatpush.msra.mxu0 %v230
    %442 = vmatpush.msra.mxu0 %v226
    %443 = vmatpush.msra.mxu0 %v222
    %444 = vmatpush.msra.mxu0 %v218
    %445 = vmatpush.msra.mxu0 %v214
    %446 = vmatpush.msra.mxu0 %v210
    %447 = vmatpush.msra.mxu0 %v206
    %448 = vmatpush.msra.mxu0 %v202
    %449 = vmatpush.msra.mxu0 %v198
    %450 = vmatpush.msra.mxu0 %v194
    %451 = vmatpush.msra.mxu0 %v190
    %452 = vmatpush.msra.mxu0 %v186
    %453 = vmatmul.f32.gmra.mxu0 %v396
    %v454 = vpop.f32.mrf.mxu0
    %v455 = vadd.f32 0.0, %v454
    %456 = vdwg.mxu0
    %457 = vmatpush.msra.mxu0 %v247
    %458 = vmatpush.msra.mxu0 %v243
    %459 = vmatpush.msra.mxu0 %v239
    %460 = vmatpush.msra.mxu0 %v235
    %461 = vmatpush.msra.mxu0 %v231
    %462 = vmatpush.msra.mxu0 %v227
    %463 = vmatpush.msra.mxu0 %v223
    %464 = vmatpush.msra.mxu0 %v219
    %465 = vmatpush.msra.mxu0 %v215
    %466 = vmatpush.msra.mxu0 %v211
    %467 = vmatpush.msra.mxu0 %v207
    %468 = vmatpush.msra.mxu0 %v203
    %469 = vmatpush.msra.mxu0 %v199
    %470 = vmatpush.msra.mxu0 %v195
    %471 = vmatpush.msra.mxu0 %v191
    %472 = vmatpush.msra.mxu0 %v187
    %473 = vmatmul.f32.gmra.mxu0 %v396
    %v474 = vpop.f32.mrf.mxu0
    %v475 = vadd.f32 0.0, %v474
    %476 = vdwg.mxu0
    %v477 = vadd.f32 %v415, %v126
    %v478 = vadd.f32 %v435, %v167
    %v479 = vtanh.pop %v477
    %v480 = vtanh.pop %v478
    %v481 = vmul.f32 %v479, 0.5
    %v482 = vmul.f32 %v480, 0.5
    %v483 = vadd.f32 %v481, 0.5
    %v484 = vadd.f32 %v482, 0.5
    %v485 = vsel %vm53, %v479, %v483
    %v486 = vsel %vm54, %v480, %v484
    %487 = vrot.lane.b32.xlu0 %v485, 64
    %v488 = vpop.permute.xlu0 %487
    %v489 = vmul.f32 %v485, %v488
    %490 = vrot.lane.b32.xlu0 %v486, 64
    %v491 = vpop.permute.xlu0 %490
    %v492 = vsel %vm47, %v486, %v491
    %v493 = vsel %vm47, %v491, %v486
    %v494 = vmul.f32 %v492, %v367
    %v495 = vadd.f32 %v494, %v489
    %v496 = vtanh.pop %v495
    %v497 = vmul.f32 %v493, %v496
    %v498 = vadd.f32 %v455, %v371
    %v499 = vadd.f32 %v475, %v372
    %v500 = vtanh.pop %v498
    %v501 = vtanh.pop %v499
    %v502 = vmul.f32 %v500, 0.5
    %v503 = vmul.f32 %v501, 0.5
    %v504 = vadd.f32 %v502, 0.5
    %v505 = vadd.f32 %v503, 0.5
    %v506 = vsel %vm53, %v500, %v504
    %v507 = vsel %vm54, %v501, %v505
    %508 = vrot.lane.b32.xlu0 %v506, 64
    %v509 = vpop.permute.xlu0 %508
    %v510 = vmul.f32 %v506, %v509
    %511 = vrot.lane.b32.xlu0 %v507, 64
    %v512 = vpop.permute.xlu0 %511
    %v513 = vsel %vm47, %v507, %v512
    %v514 = vsel %vm47, %v512, %v507
    %v515 = vmul.f32 %v513, %v393
    %v516 = vadd.f32 %v515, %v510
    %v517 = vtanh.pop %v516
    %v518 = vmul.f32 %v514, %v517
    %v519 = vsel %vm47, %v497, %v518
    %520 = vmatpush.msra.mxu0 %v244
    %521 = vmatpush.msra.mxu0 %v240
    %522 = vmatpush.msra.mxu0 %v236
    %523 = vmatpush.msra.mxu0 %v232
    %524 = vmatpush.msra.mxu0 %v228
    %525 = vmatpush.msra.mxu0 %v224
    %526 = vmatpush.msra.mxu0 %v220
    %527 = vmatpush.msra.mxu0 %v216
    %528 = vmatpush.msra.mxu0 %v212
    %529 = vmatpush.msra.mxu0 %v208
    %530 = vmatpush.msra.mxu0 %v204
    %531 = vmatpush.msra.mxu0 %v200
    %532 = vmatpush.msra.mxu0 %v196
    %533 = vmatpush.msra.mxu0 %v192
    %534 = vmatpush.msra.mxu0 %v188
    %535 = vmatpush.msra.mxu0 %v184
    %536 = vmatmul.f32.gmra.mxu0 %v519
    %v537 = vpop.f32.mrf.mxu0
    %v538 = vadd.f32 0.0, %v537
    %539 = vdwg.mxu0
    %540 = vmatpush.msra.mxu0 %v245
    %541 = vmatpush.msra.mxu0 %v241
    %542 = vmatpush.msra.mxu0 %v237
    %543 = vmatpush.msra.mxu0 %v233
    %544 = vmatpush.msra.mxu0 %v229
    %545 = vmatpush.msra.mxu0 %v225
    %546 = vmatpush.msra.mxu0 %v221
    %547 = vmatpush.msra.mxu0 %v217
    %548 = vmatpush.msra.mxu0 %v213
    %549 = vmatpush.msra.mxu0 %v209
    %550 = vmatpush.msra.mxu0 %v205
    %551 = vmatpush.msra.mxu0 %v201
    %552 = vmatpush.msra.mxu0 %v197
    %553 = vmatpush.msra.mxu0 %v193
    %554 = vmatpush.msra.mxu0 %v189
    %555 = vmatpush.msra.mxu0 %v185
    %556 = vmatmul.f32.gmra.mxu0 %v519
    %v557 = vpop.f32.mrf.mxu0
    %v558 = vadd.f32 0.0, %v557
    %559 = vdwg.mxu0
    %560 = vmatpush.msra.mxu0 %v246
    %561 = vmatpush.msra.mxu0 %v242
    %562 = vmatpush.msra.mxu0 %v238
    %563 = vmatpush.msra.mxu0 %v234
    %564 = vmatpush.msra.mxu0 %v230
    %565 = vmatpush.msra.mxu0 %v226
    %566 = vmatpush.msra.mxu0 %v222
    %567 = vmatpush.msra.mxu0 %v218
    %568 = vmatpush.msra.mxu0 %v214
    %569 = vmatpush.msra.mxu0 %v210
    %570 = vmatpush.msra.mxu0 %v206
    %571 = vmatpush.msra.mxu0 %v202
    %572 = vmatpush.msra.mxu0 %v198
    %573 = vmatpush.msra.mxu0 %v194
    %574 = vmatpush.msra.mxu0 %v190
    %575 = vmatpush.msra.mxu0 %v186
    %576 = vmatmul.f32.gmra.mxu0 %v519
    %v577 = vpop.f32.mrf.mxu0
    %v578 = vadd.f32 0.0, %v577
    %579 = vdwg.mxu0
    %580 = vmatpush.msra.mxu0 %v247
    %581 = vmatpush.msra.mxu0 %v243
    %582 = vmatpush.msra.mxu0 %v239
    %583 = vmatpush.msra.mxu0 %v235
    %584 = vmatpush.msra.mxu0 %v231
    %585 = vmatpush.msra.mxu0 %v227
    %586 = vmatpush.msra.mxu0 %v223
    %587 = vmatpush.msra.mxu0 %v219
    %588 = vmatpush.msra.mxu0 %v215
    %589 = vmatpush.msra.mxu0 %v211
    %590 = vmatpush.msra.mxu0 %v207
    %591 = vmatpush.msra.mxu0 %v203
    %592 = vmatpush.msra.mxu0 %v199
    %593 = vmatpush.msra.mxu0 %v195
    %594 = vmatpush.msra.mxu0 %v191
    %595 = vmatpush.msra.mxu0 %v187
    %596 = vmatmul.f32.gmra.mxu0 %v519
    %v597 = vpop.f32.mrf.mxu0
    %v598 = vadd.f32 0.0, %v597
    %599 = vdwg.mxu0
    %v600 = vadd.f32 %v538, %v129
    %v601 = vadd.f32 %v558, %v170
    %v602 = vtanh.pop %v600
    %v603 = vtanh.pop %v601
    %v604 = vmul.f32 %v602, 0.5
    %v605 = vmul.f32 %v603, 0.5
    %v606 = vadd.f32 %v604, 0.5
    %v607 = vadd.f32 %v605, 0.5
    %v608 = vsel %vm53, %v602, %v606
    %v609 = vsel %vm54, %v603, %v607
    %610 = vrot.lane.b32.xlu0 %v608, 64
    %v611 = vpop.permute.xlu0 %610
    %v612 = vmul.f32 %v608, %v611
    %613 = vrot.lane.b32.xlu0 %v609, 64
    %v614 = vpop.permute.xlu0 %613
    %v615 = vsel %vm47, %v609, %v614
    %v616 = vsel %vm47, %v614, %v609
    %v617 = vmul.f32 %v615, %v495
    %v618 = vadd.f32 %v617, %v612
    %v619 = vtanh.pop %v618
    %v620 = vmul.f32 %v616, %v619
    %v621 = vadd.f32 %v578, %v371
    %v622 = vadd.f32 %v598, %v372
    %v623 = vtanh.pop %v621
    %v624 = vtanh.pop %v622
    %v625 = vmul.f32 %v623, 0.5
    %v626 = vmul.f32 %v624, 0.5
    %v627 = vadd.f32 %v625, 0.5
    %v628 = vadd.f32 %v626, 0.5
    %v629 = vsel %vm53, %v623, %v627
    %v630 = vsel %vm54, %v624, %v628
    %631 = vrot.lane.b32.xlu0 %v629, 64
    %v632 = vpop.permute.xlu0 %631
    %v633 = vmul.f32 %v629, %v632
    %634 = vrot.lane.b32.xlu0 %v630, 64
    %v635 = vpop.permute.xlu0 %634
    %v636 = vsel %vm47, %v630, %v635
    %v637 = vsel %vm47, %v635, %v630
    %v638 = vmul.f32 %v636, %v516
    %v639 = vadd.f32 %v638, %v633
    %v640 = vtanh.pop %v639
    %v641 = vmul.f32 %v637, %v640
    %v642 = vsel %vm47, %v620, %v641
    %643 = vmatpush.msra.mxu0 %v244
    %644 = vmatpush.msra.mxu0 %v240
    %645 = vmatpush.msra.mxu0 %v236
    %646 = vmatpush.msra.mxu0 %v232
    %647 = vmatpush.msra.mxu0 %v228
    %648 = vmatpush.msra.mxu0 %v224
    %649 = vmatpush.msra.mxu0 %v220
    %650 = vmatpush.msra.mxu0 %v216
    %651 = vmatpush.msra.mxu0 %v212
    %652 = vmatpush.msra.mxu0 %v208
    %653 = vmatpush.msra.mxu0 %v204
    %654 = vmatpush.msra.mxu0 %v200
    %655 = vmatpush.msra.mxu0 %v196
    %656 = vmatpush.msra.mxu0 %v192
    %657 = vmatpush.msra.mxu0 %v188
    %658 = vmatpush.msra.mxu0 %v184
    %659 = vmatmul.f32.gmra.mxu0 %v642
    %v660 = vpop.f32.mrf.mxu0
    %v661 = vadd.f32 0.0, %v660
    %662 = vdwg.mxu0
    %663 = vmatpush.msra.mxu0 %v245
    %664 = vmatpush.msra.mxu0 %v241
    %665 = vmatpush.msra.mxu0 %v237
    %666 = vmatpush.msra.mxu0 %v233
    %667 = vmatpush.msra.mxu0 %v229
    %668 = vmatpush.msra.mxu0 %v225
    %669 = vmatpush.msra.mxu0 %v221
    %670 = vmatpush.msra.mxu0 %v217
    %671 = vmatpush.msra.mxu0 %v213
    %672 = vmatpush.msra.mxu0 %v209
    %673 = vmatpush.msra.mxu0 %v205
    %674 = vmatpush.msra.mxu0 %v201
    %675 = vmatpush.msra.mxu0 %v197
    %676 = vmatpush.msra.mxu0 %v193
    %677 = vmatpush.msra.mxu0 %v189
    %678 = vmatpush.msra.mxu0 %v185
    %679 = vmatmul.f32.gmra.mxu0 %v642
    %v680 = vpop.f32.mrf.mxu0
    %v681 = vadd.f32 0.0, %v680
    %682 = vdwg.mxu0
    %683 = vmatpush.msra.mxu0 %v246
    %684 = vmatpush.msra.mxu0 %v242
    %685 = vmatpush.msra.mxu0 %v238
    %686 = vmatpush.msra.mxu0 %v234
    %687 = vmatpush.msra.mxu0 %v230
    %688 = vmatpush.msra.mxu0 %v226
    %689 = vmatpush.msra.mxu0 %v222
    %690 = vmatpush.msra.mxu0 %v218
    %691 = vmatpush.msra.mxu0 %v214
    %692 = vmatpush.msra.mxu0 %v210
    %693 = vmatpush.msra.mxu0 %v206
    %694 = vmatpush.msra.mxu0 %v202
    %695 = vmatpush.msra.mxu0 %v198
    %696 = vmatpush.msra.mxu0 %v194
    %697 = vmatpush.msra.mxu0 %v190
    %698 = vmatpush.msra.mxu0 %v186
    %699 = vmatmul.f32.gmra.mxu0 %v642
    %v700 = vpop.f32.mrf.mxu0
    %v701 = vadd.f32 0.0, %v700
    %702 = vdwg.mxu0
    %703 = vmatpush.msra.mxu0 %v247
    %704 = vmatpush.msra.mxu0 %v243
    %705 = vmatpush.msra.mxu0 %v239
    %706 = vmatpush.msra.mxu0 %v235
    %707 = vmatpush.msra.mxu0 %v231
    %708 = vmatpush.msra.mxu0 %v227
    %709 = vmatpush.msra.mxu0 %v223
    %710 = vmatpush.msra.mxu0 %v219
    %711 = vmatpush.msra.mxu0 %v215
    %712 = vmatpush.msra.mxu0 %v211
    %713 = vmatpush.msra.mxu0 %v207
    %714 = vmatpush.msra.mxu0 %v203
    %715 = vmatpush.msra.mxu0 %v199
    %716 = vmatpush.msra.mxu0 %v195
    %717 = vmatpush.msra.mxu0 %v191
    %718 = vmatpush.msra.mxu0 %v187
    %719 = vmatmul.f32.gmra.mxu0 %v642
    %v720 = vpop.f32.mrf.mxu0
    %v721 = vadd.f32 0.0, %v720
    %722 = vdwg.mxu0
    %v723 = vadd.f32 %v661, %v132
    %v724 = vadd.f32 %v681, %v173
    %v725 = vtanh.pop %v723
    %v726 = vtanh.pop %v724
    %v727 = vmul.f32 %v725, 0.5
    %v728 = vmul.f32 %v726, 0.5
    %v729 = vadd.f32 %v727, 0.5
    %v730 = vadd.f32 %v728, 0.5
    %v731 = vsel %vm53, %v725, %v729
    %v732 = vsel %vm54, %v726, %v730
    %733 = vrot.lane.b32.xlu0 %v731, 64
    %v734 = vpop.permute.xlu0 %733
    %v735 = vmul.f32 %v731, %v734
    %736 = vrot.lane.b32.xlu0 %v732, 64
    %v737 = vpop.permute.xlu0 %736
    %v738 = vsel %vm47, %v732, %v737
    %v739 = vsel %vm47, %v737, %v732
    %v740 = vmul.f32 %v738, %v618
    %v741 = vadd.f32 %v740, %v735
    %v742 = vtanh.pop %v741
    %v743 = vmul.f32 %v739, %v742
    %v744 = vadd.f32 %v701, %v371
    %v745 = vadd.f32 %v721, %v372
    %v746 = vtanh.pop %v744
    %v747 = vtanh.pop %v745
    %v748 = vmul.f32 %v746, 0.5
    %v749 = vmul.f32 %v747, 0.5
    %v750 = vadd.f32 %v748, 0.5
    %v751 = vadd.f32 %v749, 0.5
    %v752 = vsel %vm53, %v746, %v750
    %v753 = vsel %vm54, %v747, %v751
    %754 = vrot.lane.b32.xlu0 %v752, 64
    %v755 = vpop.permute.xlu0 %754
    %v756 = vmul.f32 %v752, %v755
    %757 = vrot.lane.b32.xlu0 %v753, 64
    %v758 = vpop.permute.xlu0 %757
    %v759 = vsel %vm47, %v753, %v758
    %v760 = vsel %vm47, %v758, %v753
    %v761 = vmul.f32 %v759, %v639
    %v762 = vadd.f32 %v761, %v756
    %v763 = vtanh.pop %v762
    %v764 = vmul.f32 %v760, %v763
    %v765 = vsel %vm47, %v743, %v764
    %766 = vmatpush.msra.mxu0 %v244
    %767 = vmatpush.msra.mxu0 %v240
    %768 = vmatpush.msra.mxu0 %v236
    %769 = vmatpush.msra.mxu0 %v232
    %770 = vmatpush.msra.mxu0 %v228
    %771 = vmatpush.msra.mxu0 %v224
    %772 = vmatpush.msra.mxu0 %v220
    %773 = vmatpush.msra.mxu0 %v216
    %774 = vmatpush.msra.mxu0 %v212
    %775 = vmatpush.msra.mxu0 %v208
    %776 = vmatpush.msra.mxu0 %v204
    %777 = vmatpush.msra.mxu0 %v200
    %778 = vmatpush.msra.mxu0 %v196
    %779 = vmatpush.msra.mxu0 %v192
    %780 = vmatpush.msra.mxu0 %v188
    %781 = vmatpush.msra.mxu0 %v184
    %782 = vmatmul.f32.gmra.mxu0 %v765
    %v783 = vpop.f32.mrf.mxu0
    %v784 = vadd.f32 0.0, %v783
    %785 = vdwg.mxu0
    %786 = vmatpush.msra.mxu0 %v245
    %787 = vmatpush.msra.mxu0 %v241
    %788 = vmatpush.msra.mxu0 %v237
    %789 = vmatpush.msra.mxu0 %v233
    %790 = vmatpush.msra.mxu0 %v229
    %791 = vmatpush.msra.mxu0 %v225
    %792 = vmatpush.msra.mxu0 %v221
    %793 = vmatpush.msra.mxu0 %v217
    %794 = vmatpush.msra.mxu0 %v213
    %795 = vmatpush.msra.mxu0 %v209
    %796 = vmatpush.msra.mxu0 %v205
    %797 = vmatpush.msra.mxu0 %v201
    %798 = vmatpush.msra.mxu0 %v197
    %799 = vmatpush.msra.mxu0 %v193
    %800 = vmatpush.msra.mxu0 %v189
    %801 = vmatpush.msra.mxu0 %v185
    %802 = vmatmul.f32.gmra.mxu0 %v765
    %v803 = vpop.f32.mrf.mxu0
    %v804 = vadd.f32 0.0, %v803
    %805 = vdwg.mxu0
    %806 = vmatpush.msra.mxu0 %v246
    %807 = vmatpush.msra.mxu0 %v242
    %808 = vmatpush.msra.mxu0 %v238
    %809 = vmatpush.msra.mxu0 %v234
    %810 = vmatpush.msra.mxu0 %v230
    %811 = vmatpush.msra.mxu0 %v226
    %812 = vmatpush.msra.mxu0 %v222
    %813 = vmatpush.msra.mxu0 %v218
    %814 = vmatpush.msra.mxu0 %v214
    %815 = vmatpush.msra.mxu0 %v210
    %816 = vmatpush.msra.mxu0 %v206
    %817 = vmatpush.msra.mxu0 %v202
    %818 = vmatpush.msra.mxu0 %v198
    %819 = vmatpush.msra.mxu0 %v194
    %820 = vmatpush.msra.mxu0 %v190
    %821 = vmatpush.msra.mxu0 %v186
    %822 = vmatmul.f32.gmra.mxu0 %v765
    %v823 = vpop.f32.mrf.mxu0
    %v824 = vadd.f32 0.0, %v823
    %825 = vdwg.mxu0
    %826 = vmatpush.msra.mxu0 %v247
    %827 = vmatpush.msra.mxu0 %v243
    %828 = vmatpush.msra.mxu0 %v239
    %829 = vmatpush.msra.mxu0 %v235
    %830 = vmatpush.msra.mxu0 %v231
    %831 = vmatpush.msra.mxu0 %v227
    %832 = vmatpush.msra.mxu0 %v223
    %833 = vmatpush.msra.mxu0 %v219
    %834 = vmatpush.msra.mxu0 %v215
    %835 = vmatpush.msra.mxu0 %v211
    %836 = vmatpush.msra.mxu0 %v207
    %837 = vmatpush.msra.mxu0 %v203
    %838 = vmatpush.msra.mxu0 %v199
    %839 = vmatpush.msra.mxu0 %v195
    %840 = vmatpush.msra.mxu0 %v191
    %841 = vmatpush.msra.mxu0 %v187
    %842 = vmatmul.f32.gmra.mxu0 %v765
    %v843 = vpop.f32.mrf.mxu0
    %v844 = vadd.f32 0.0, %v843
    %845 = vdwg.mxu0
    %v846 = vadd.f32 %v784, %v135
    %v847 = vadd.f32 %v804, %v176
    %v848 = vtanh.pop %v846
    %v849 = vtanh.pop %v847
    %v850 = vmul.f32 %v848, 0.5
    %v851 = vmul.f32 %v849, 0.5
    %v852 = vadd.f32 %v850, 0.5
    %v853 = vadd.f32 %v851, 0.5
    %v854 = vsel %vm53, %v848, %v852
    %v855 = vsel %vm54, %v849, %v853
    %856 = vrot.lane.b32.xlu0 %v854, 64
    %v857 = vpop.permute.xlu0 %856
    %v858 = vmul.f32 %v854, %v857
    %859 = vrot.lane.b32.xlu0 %v855, 64
    %v860 = vpop.permute.xlu0 %859
    %v861 = vsel %vm47, %v855, %v860
    %v862 = vsel %vm47, %v860, %v855
    %v863 = vmul.f32 %v861, %v741
    %v864 = vadd.f32 %v863, %v858
    %v865 = vtanh.pop %v864
    %v866 = vmul.f32 %v862, %v865
    %v867 = vadd.f32 %v824, %v371
    %v868 = vadd.f32 %v844, %v372
    %v869 = vtanh.pop %v867
    %v870 = vtanh.pop %v868
    %v871 = vmul.f32 %v869, 0.5
    %v872 = vmul.f32 %v870, 0.5
    %v873 = vadd.f32 %v871, 0.5
    %v874 = vadd.f32 %v872, 0.5
    %v875 = vsel %vm53, %v869, %v873
    %v876 = vsel %vm54, %v870, %v874
    %877 = vrot.lane.b32.xlu0 %v875, 64
    %v878 = vpop.permute.xlu0 %877
    %v879 = vmul.f32 %v875, %v878
    %880 = vrot.lane.b32.xlu0 %v876, 64
    %v881 = vpop.permute.xlu0 %880
    %v882 = vsel %vm47, %v876, %v881
    %v883 = vsel %vm47, %v881, %v876
    %v884 = vmul.f32 %v882, %v762
    %v885 = vadd.f32 %v884, %v879
    %v886 = vtanh.pop %v885
    %v887 = vmul.f32 %v883, %v886
    %v888 = vsel %vm47, %v866, %v887
    %889 = vmatpush.msra.mxu0 %v244
    %890 = vmatpush.msra.mxu0 %v240
    %891 = vmatpush.msra.mxu0 %v236
    %892 = vmatpush.msra.mxu0 %v232
    %893 = vmatpush.msra.mxu0 %v228
    %894 = vmatpush.msra.mxu0 %v224
    %895 = vmatpush.msra.mxu0 %v220
    %896 = vmatpush.msra.mxu0 %v216
    %897 = vmatpush.msra.mxu0 %v212
    %898 = vmatpush.msra.mxu0 %v208
    %899 = vmatpush.msra.mxu0 %v204
    %900 = vmatpush.msra.mxu0 %v200
    %901 = vmatpush.msra.mxu0 %v196
    %902 = vmatpush.msra.mxu0 %v192
    %903 = vmatpush.msra.mxu0 %v188
    %904 = vmatpush.msra.mxu0 %v184
    %905 = vmatmul.f32.gmra.mxu0 %v888
    %v906 = vpop.f32.mrf.mxu0
    %v907 = vadd.f32 0.0, %v906
    %908 = vdwg.mxu0
    %909 = vmatpush.msra.mxu0 %v245
    %910 = vmatpush.msra.mxu0 %v241
    %911 = vmatpush.msra.mxu0 %v237
    %912 = vmatpush.msra.mxu0 %v233
    %913 = vmatpush.msra.mxu0 %v229
    %914 = vmatpush.msra.mxu0 %v225
    %915 = vmatpush.msra.mxu0 %v221
    %916 = vmatpush.msra.mxu0 %v217
    %917 = vmatpush.msra.mxu0 %v213
    %918 = vmatpush.msra.mxu0 %v209
    %919 = vmatpush.msra.mxu0 %v205
    %920 = vmatpush.msra.mxu0 %v201
    %921 = vmatpush.msra.mxu0 %v197
    %922 = vmatpush.msra.mxu0 %v193
    %923 = vmatpush.msra.mxu0 %v189
    %924 = vmatpush.msra.mxu0 %v185
    %925 = vmatmul.f32.gmra.mxu0 %v888
    %v926 = vpop.f32.mrf.mxu0
    %v927 = vadd.f32 0.0, %v926
    %928 = vdwg.mxu0
    %929 = vmatpush.msra.mxu0 %v246
    %930 = vmatpush.msra.mxu0 %v242
    %931 = vmatpush.msra.mxu0 %v238
    %932 = vmatpush.msra.mxu0 %v234
    %933 = vmatpush.msra.mxu0 %v230
    %934 = vmatpush.msra.mxu0 %v226
    %935 = vmatpush.msra.mxu0 %v222
    %936 = vmatpush.msra.mxu0 %v218
    %937 = vmatpush.msra.mxu0 %v214
    %938 = vmatpush.msra.mxu0 %v210
    %939 = vmatpush.msra.mxu0 %v206
    %940 = vmatpush.msra.mxu0 %v202
    %941 = vmatpush.msra.mxu0 %v198
    %942 = vmatpush.msra.mxu0 %v194
    %943 = vmatpush.msra.mxu0 %v190
    %944 = vmatpush.msra.mxu0 %v186
    %945 = vmatmul.f32.gmra.mxu0 %v888
    %v946 = vpop.f32.mrf.mxu0
    %v947 = vadd.f32 0.0, %v946
    %948 = vdwg.mxu0
    %949 = vmatpush.msra.mxu0 %v247
    %950 = vmatpush.msra.mxu0 %v243
    %951 = vmatpush.msra.mxu0 %v239
    %952 = vmatpush.msra.mxu0 %v235
    %953 = vmatpush.msra.mxu0 %v231
    %954 = vmatpush.msra.mxu0 %v227
    %955 = vmatpush.msra.mxu0 %v223
    %956 = vmatpush.msra.mxu0 %v219
    %957 = vmatpush.msra.mxu0 %v215
    %958 = vmatpush.msra.mxu0 %v211
    %959 = vmatpush.msra.mxu0 %v207
    %960 = vmatpush.msra.mxu0 %v203
    %961 = vmatpush.msra.mxu0 %v199
    %962 = vmatpush.msra.mxu0 %v195
    %963 = vmatpush.msra.mxu0 %v191
    %964 = vmatpush.msra.mxu0 %v187
    %965 = vmatmul.f32.gmra.mxu0 %v888
    %v966 = vpop.f32.mrf.mxu0
    %v967 = vadd.f32 0.0, %v966
    %968 = vdwg.mxu0
    %v969 = vadd.f32 %v907, %v138
    %v970 = vadd.f32 %v927, %v179
    %v971 = vtanh.pop %v969
    %v972 = vtanh.pop %v970
    %v973 = vmul.f32 %v971, 0.5
    %v974 = vmul.f32 %v972, 0.5
    %v975 = vadd.f32 %v973, 0.5
    %v976 = vadd.f32 %v974, 0.5
    %v977 = vsel %vm53, %v971, %v975
    %v978 = vsel %vm54, %v972, %v976
    %979 = vrot.lane.b32.xlu0 %v977, 64
    %v980 = vpop.permute.xlu0 %979
    %v981 = vmul.f32 %v977, %v980
    %982 = vrot.lane.b32.xlu0 %v978, 64
    %v983 = vpop.permute.xlu0 %982
    %v984 = vsel %vm47, %v978, %v983
    %v985 = vsel %vm47, %v983, %v978
    %v986 = vmul.f32 %v984, %v864
    %v987 = vadd.f32 %v986, %v981
    %v988 = vtanh.pop %v987
    %v989 = vmul.f32 %v985, %v988
    %v990 = vadd.f32 %v947, %v371
    %v991 = vadd.f32 %v967, %v372
    %v992 = vtanh.pop %v990
    %v993 = vtanh.pop %v991
    %v994 = vmul.f32 %v992, 0.5
    %v995 = vmul.f32 %v993, 0.5
    %v996 = vadd.f32 %v994, 0.5
    %v997 = vadd.f32 %v995, 0.5
    %v998 = vsel %vm53, %v992, %v996
    %v999 = vsel %vm54, %v993, %v997
    %1000 = vrot.lane.b32.xlu0 %v998, 64
    %v1001 = vpop.permute.xlu0 %1000
    %v1002 = vmul.f32 %v998, %v1001
    %1003 = vrot.lane.b32.xlu0 %v999, 64
    %v1004 = vpop.permute.xlu0 %1003
    %v1005 = vsel %vm47, %v999, %v1004
    %v1006 = vsel %vm47, %v1004, %v999
    %v1007 = vmul.f32 %v1005, %v885
    %v1008 = vadd.f32 %v1007, %v1002
    %v1009 = vtanh.pop %v1008
    %v1010 = vmul.f32 %v1006, %v1009
    %v1011 = vsel %vm47, %v989, %v1010
    %1012 = vmatpush.msra.mxu0 %v244
    %1013 = vmatpush.msra.mxu0 %v240
    %1014 = vmatpush.msra.mxu0 %v236
    %1015 = vmatpush.msra.mxu0 %v232
    %1016 = vmatpush.msra.mxu0 %v228
    %1017 = vmatpush.msra.mxu0 %v224
    %1018 = vmatpush.msra.mxu0 %v220
    %1019 = vmatpush.msra.mxu0 %v216
    %1020 = vmatpush.msra.mxu0 %v212
    %1021 = vmatpush.msra.mxu0 %v208
    %1022 = vmatpush.msra.mxu0 %v204
    %1023 = vmatpush.msra.mxu0 %v200
    %1024 = vmatpush.msra.mxu0 %v196
    %1025 = vmatpush.msra.mxu0 %v192
    %1026 = vmatpush.msra.mxu0 %v188
    %1027 = vmatpush.msra.mxu0 %v184
    %1028 = vmatmul.f32.gmra.mxu0 %v1011
    %v1029 = vpop.f32.mrf.mxu0
    %v1030 = vadd.f32 0.0, %v1029
    %1031 = vdwg.mxu0
    %1032 = vmatpush.msra.mxu0 %v245
    %1033 = vmatpush.msra.mxu0 %v241
    %1034 = vmatpush.msra.mxu0 %v237
    %1035 = vmatpush.msra.mxu0 %v233
    %1036 = vmatpush.msra.mxu0 %v229
    %1037 = vmatpush.msra.mxu0 %v225
    %1038 = vmatpush.msra.mxu0 %v221
    %1039 = vmatpush.msra.mxu0 %v217
    %1040 = vmatpush.msra.mxu0 %v213
    %1041 = vmatpush.msra.mxu0 %v209
    %1042 = vmatpush.msra.mxu0 %v205
    %1043 = vmatpush.msra.mxu0 %v201
    %1044 = vmatpush.msra.mxu0 %v197
    %1045 = vmatpush.msra.mxu0 %v193
    %1046 = vmatpush.msra.mxu0 %v189
    %1047 = vmatpush.msra.mxu0 %v185
    %1048 = vmatmul.f32.gmra.mxu0 %v1011
    %v1049 = vpop.f32.mrf.mxu0
    %v1050 = vadd.f32 0.0, %v1049
    %1051 = vdwg.mxu0
    %1052 = vmatpush.msra.mxu0 %v246
    %1053 = vmatpush.msra.mxu0 %v242
    %1054 = vmatpush.msra.mxu0 %v238
    %1055 = vmatpush.msra.mxu0 %v234
    %1056 = vmatpush.msra.mxu0 %v230
    %1057 = vmatpush.msra.mxu0 %v226
    %1058 = vmatpush.msra.mxu0 %v222
    %1059 = vmatpush.msra.mxu0 %v218
    %1060 = vmatpush.msra.mxu0 %v214
    %1061 = vmatpush.msra.mxu0 %v210
    %1062 = vmatpush.msra.mxu0 %v206
    %1063 = vmatpush.msra.mxu0 %v202
    %1064 = vmatpush.msra.mxu0 %v198
    %1065 = vmatpush.msra.mxu0 %v194
    %1066 = vmatpush.msra.mxu0 %v190
    %1067 = vmatpush.msra.mxu0 %v186
    %1068 = vmatmul.f32.gmra.mxu0 %v1011
    %v1069 = vpop.f32.mrf.mxu0
    %v1070 = vadd.f32 0.0, %v1069
    %1071 = vdwg.mxu0
    %1072 = vmatpush.msra.mxu0 %v247
    %1073 = vmatpush.msra.mxu0 %v243
    %1074 = vmatpush.msra.mxu0 %v239
    %1075 = vmatpush.msra.mxu0 %v235
    %1076 = vmatpush.msra.mxu0 %v231
    %1077 = vmatpush.msra.mxu0 %v227
    %1078 = vmatpush.msra.mxu0 %v223
    %1079 = vmatpush.msra.mxu0 %v219
    %1080 = vmatpush.msra.mxu0 %v215
    %1081 = vmatpush.msra.mxu0 %v211
    %1082 = vmatpush.msra.mxu0 %v207
    %1083 = vmatpush.msra.mxu0 %v203
    %1084 = vmatpush.msra.mxu0 %v199
    %1085 = vmatpush.msra.mxu0 %v195
    %1086 = vmatpush.msra.mxu0 %v191
    %1087 = vmatpush.msra.mxu0 %v187
    %1088 = vmatmul.f32.gmra.mxu0 %v1011
    %v1089 = vpop.f32.mrf.mxu0
    %v1090 = vadd.f32 0.0, %v1089
    %1091 = vdwg.mxu0
    %v1092 = vadd.f32 %v1030, %v141
    %v1093 = vadd.f32 %v1050, %v182
    %v1094 = vtanh.pop %v1092
    %v1095 = vtanh.pop %v1093
    %v1096 = vmul.f32 %v1094, 0.5
    %v1097 = vmul.f32 %v1095, 0.5
    %v1098 = vadd.f32 %v1096, 0.5
    %v1099 = vadd.f32 %v1097, 0.5
    %v1100 = vsel %vm53, %v1094, %v1098
    %v1101 = vsel %vm54, %v1095, %v1099
    %1102 = vrot.lane.b32.xlu0 %v1100, 64
    %v1103 = vpop.permute.xlu0 %1102
    %v1104 = vmul.f32 %v1100, %v1103
    %1105 = vrot.lane.b32.xlu0 %v1101, 64
    %v1106 = vpop.permute.xlu0 %1105
    %v1107 = vsel %vm47, %v1101, %v1106
    %v1108 = vsel %vm47, %v1106, %v1101
    %v1109 = vmul.f32 %v1107, %v987
    %v1110 = vadd.f32 %v1109, %v1104
    %v1111 = vtanh.pop %v1110
    %v1112 = vmul.f32 %v1108, %v1111
    %v1113 = vadd.f32 %v1070, %v371
    %v1114 = vadd.f32 %v1090, %v372
    %v1115 = vtanh.pop %v1113
    %v1116 = vtanh.pop %v1114
    %v1117 = vmul.f32 %v1115, 0.5
    %v1118 = vmul.f32 %v1116, 0.5
    %v1119 = vadd.f32 %v1117, 0.5
    %v1120 = vadd.f32 %v1118, 0.5
    %v1121 = vsel %vm53, %v1115, %v1119
    %v1122 = vsel %vm54, %v1116, %v1120
    %1123 = vrot.lane.b32.xlu0 %v1121, 64
    %v1124 = vpop.permute.xlu0 %1123
    %v1125 = vmul.f32 %v1121, %v1124
    %1126 = vrot.lane.b32.xlu0 %v1122, 64
    %v1127 = vpop.permute.xlu0 %1126
    %v1128 = vsel %vm47, %v1122, %v1127
    %v1129 = vsel %vm47, %v1127, %v1122
    %v1130 = vmul.f32 %v1128, %v1008
    %v1131 = vadd.f32 %v1130, %v1125
    %v1132 = vtanh.pop %v1131
    %v1133 = vmul.f32 %v1129, %v1132
    %v1134 = vsel %vm47, %v1112, %v1133
    %1135 = vmatpush.msra.mxu0 %v246
    %1136 = vmatpush.msra.mxu0 %v242
    %1137 = vmatpush.msra.mxu0 %v238
    %1138 = vmatpush.msra.mxu0 %v234
    %1139 = vmatpush.msra.mxu0 %v230
    %1140 = vmatpush.msra.mxu0 %v226
    %1141 = vmatpush.msra.mxu0 %v222
    %1142 = vmatpush.msra.mxu0 %v218
    %1143 = vmatpush.msra.mxu0 %v214
    %1144 = vmatpush.msra.mxu0 %v210
    %1145 = vmatpush.msra.mxu0 %v206
    %1146 = vmatpush.msra.mxu0 %v202
    %1147 = vmatpush.msra.mxu0 %v198
    %1148 = vmatpush.msra.mxu0 %v194
    %1149 = vmatpush.msra.mxu0 %v190
    %1150 = vmatpush.msra.mxu0 %v186
    %1151 = vmatmul.f32.gmra.mxu0 %v1134
    %v1152 = vpop.f32.mrf.mxu0
    %v1153 = vadd.f32 0.0, %v1152
    %1154 = vdwg.mxu0
    %1155 = vmatpush.msra.mxu0 %v247
    %1156 = vmatpush.msra.mxu0 %v243
    %1157 = vmatpush.msra.mxu0 %v239
    %1158 = vmatpush.msra.mxu0 %v235
    %1159 = vmatpush.msra.mxu0 %v231
    %1160 = vmatpush.msra.mxu0 %v227
    %1161 = vmatpush.msra.mxu0 %v223
    %1162 = vmatpush.msra.mxu0 %v219
    %1163 = vmatpush.msra.mxu0 %v215
    %1164 = vmatpush.msra.mxu0 %v211
    %1165 = vmatpush.msra.mxu0 %v207
    %1166 = vmatpush.msra.mxu0 %v203
    %1167 = vmatpush.msra.mxu0 %v199
    %1168 = vmatpush.msra.mxu0 %v195
    %1169 = vmatpush.msra.mxu0 %v191
    %1170 = vmatpush.msra.mxu0 %v187
    %1171 = vmatmul.f32.gmra.mxu0 %v1134
    %v1172 = vpop.f32.mrf.mxu0
    %v1173 = vadd.f32 0.0, %v1172
    %1174 = vdwg.mxu0
    %v1175 = vadd.f32 %v1153, %v371
    %v1176 = vadd.f32 %v1173, %v372
    %v1177 = vtanh.pop %v1175
    %v1178 = vtanh.pop %v1176
    %v1179 = vmul.f32 %v1177, 0.5
    %v1180 = vmul.f32 %v1178, 0.5
    %v1181 = vadd.f32 %v1179, 0.5
    %v1182 = vadd.f32 %v1180, 0.5
    %v1183 = vsel %vm53, %v1177, %v1181
    %v1184 = vsel %vm54, %v1178, %v1182
    %1185 = vrot.lane.b32.xlu0 %v1183, 64
    %v1186 = vpop.permute.xlu0 %1185
    %v1187 = vmul.f32 %v1183, %v1186
    %1188 = vrot.lane.b32.xlu0 %v1184, 64
    %v1189 = vpop.permute.xlu0 %1188
    %v1190 = vsel %vm47, %v1184, %v1189
    %v1191 = vsel %vm47, %v1189, %v1184
    %v1192 = vmul.f32 %v1190, %v1131
    %v1193 = vadd.f32 %v1192, %v1187
    %v1194 = vtanh.pop %v1193
    %v1195 = vmul.f32 %v1191, %v1194
    %1196 = vst [vmem:[%s8] sm:$0xff] %v1112
    %1197 = vst [vmem:[%s9] sm:$0xff] %v1110
    %s1198 = scalar_lea.vmem %s8, 8
    %1199 = vst [vmem:[%s1198] sm:$0xff] %v1195
    %s1200 = scalar_lea.vmem %s9, 8
    %1201 = vst [vmem:[%s1200] sm:$0xff] %v1193
    %v1202 = vld [vmem:[%s5] sm:$0xff]
    %v1203 = vld [vmem:[%s5 + $0x8] sm:$0xff]
    %v1204 = vld [vmem:[%s5 + $0x10] sm:$0xff]
    %v1205 = vld [vmem:[%s5 + $0x18] sm:$0xff]
    %v1206 = vld [vmem:[%s5 + $0x20] sm:$0xff]
    %v1207 = vld [vmem:[%s5 + $0x28] sm:$0xff]
    %v1208 = vld [vmem:[%s5 + $0x30] sm:$0xff]
    %v1209 = vld [vmem:[%s5 + $0x38] sm:$0xff]
    %v1210 = vld [vmem:[%s5 + $0x40] sm:$0xff]
    %v1211 = vld [vmem:[%s5 + $0x48] sm:$0xff]
    %v1212 = vld [vmem:[%s5 + $0x50] sm:$0xff]
    %v1213 = vld [vmem:[%s5 + $0x58] sm:$0xff]
    %v1214 = vld [vmem:[%s5 + $0x60] sm:$0xff]
    %v1215 = vld [vmem:[%s5 + $0x68] sm:$0xff]
    %v1216 = vld [vmem:[%s5 + $0x70] sm:$0xff]
    %v1217 = vld [vmem:[%s5 + $0x78] sm:$0xff]
    %v1218 = vld [vmem:[%s6] sm:$0x1]
    %v1220 = vperm.slane %v1218, 0
    %1222 = vmatpush.msra.mxu0 %v1217
    %1223 = vmatpush.msra.mxu0 %v1216
    %1224 = vmatpush.msra.mxu0 %v1215
    %1225 = vmatpush.msra.mxu0 %v1214
    %1226 = vmatpush.msra.mxu0 %v1213
    %1227 = vmatpush.msra.mxu0 %v1212
    %1228 = vmatpush.msra.mxu0 %v1211
    %1229 = vmatpush.msra.mxu0 %v1210
    %1230 = vmatpush.msra.mxu0 %v1209
    %1231 = vmatpush.msra.mxu0 %v1208
    %1232 = vmatpush.msra.mxu0 %v1207
    %1233 = vmatpush.msra.mxu0 %v1206
    %1234 = vmatpush.msra.mxu0 %v1205
    %1235 = vmatpush.msra.mxu0 %v1204
    %1236 = vmatpush.msra.mxu0 %v1203
    %1237 = vmatpush.msra.mxu0 %v1202
    %1238 = vmatmul.f32.gmra.mxu0 %v1195
    %v1239 = vpop.f32.mrf.mxu0
    %v1240 = vadd.f32 %v1220, %v1239
    %1241 = vdwg.mxu0
    %v1242 = vxor.u32 %v1240, 2147483648
    %v1243 = vmul.f32 %v1242, 1.442695
    %v1244 = vpow.pop %v1243
    %v1245 = vadd.f32 %v1244, 1.0
    %v1246 = vrcp.pop %v1245
    %v1247 = vmul.f32 %v1245, %v1246
    %v1248 = vsub.f32 1.0, %v1247
    %v1249 = vmul.f32 %v1246, %v1248
    %v1250 = vadd.f32 %v1246, %v1249
    %vm1251 = vweird.f32 %v1245
    %vm1252 = vweird.f32 %v1246
    %vm1253 = vmor %vm1251, %vm1252
    %v1254 = vsel %vm1253, %v1246, %v1250
    %v1255 = vand.u32 2147483647, %v1245
    %vm1256 = vcmp.eq.f32.partialorder %v1255, 8.507059e+37
    %v1257 = vand.u32 %v1245, 2147483648
    %v1258 = vor.u32 1.1754944e-38, %v1257
    %v1259 = vsel %vm1256, %v1258, %v1254
    %v1260 = vmul.f32 1.0, %v1259
    %1261 = vst [vmem:[%s7] sm:$0xff] %v1260
    // Predicated region
    $region34: #{lstm_forward.1} parent=1 // pred_check
      _
    $region35: #{lstm_forward.1} parent=1 // pred_check_branch
      %1263 = sbr.rel (0) target = $region37
    $region36: #{lstm_forward.1} parent=1 // pred_region
      _
    $region37: #{lstm_forward.1} parent=1 // pred_fallthru
      _
    // Predicated region
    $region38: #{lstm_forward.1} parent=1 // pred_check
      _
    $region39: #{lstm_forward.1} parent=1 // pred_check_branch
      %1265 = sbr.rel (0) target = $region41
    $region40: #{lstm_forward.1} parent=1 // pred_region
      _
    $region41: #{lstm_forward.1} parent=1 // pred_fallthru
      _
    // Predicated region
    $region42: #{lstm_forward.1} parent=1 // pred_check
      _
    $region43: #{lstm_forward.1} parent=1 // pred_check_branch
      %1267 = sbr.rel (0) target = $region45
    $region44: #{lstm_forward.1} parent=1 // pred_region
      _
    $region45: #{lstm_forward.1} parent=1 // pred_fallthru
      _
    // Predicated region
    $region46: #{lstm_forward.1} parent=1 // pred_check
      _
    $region47: #{lstm_forward.1} parent=1 // pred_check_branch
      %1269 = sbr.rel (0) target = $region49
    $region48: #{lstm_forward.1} parent=1 // pred_region
      _
    $region49: #{lstm_forward.1} parent=1 // pred_fallthru
      _
    // Predicated region
    $region50: #{lstm_forward.1} parent=1 // pred_check
      _
    $region51: #{lstm_forward.1} parent=1 // pred_check_branch
      %1271 = sbr.rel (0) target = $region53
    $region52: #{lstm_forward.1} parent=1 // pred_region
      _
    $region53: #{lstm_forward.1} parent=1 // pred_fallthru
      _
    // Predicated region
    $region54: #{lstm_forward.1} parent=1 // pred_check
      _
    $region55: #{lstm_forward.1} parent=1 // pred_check_branch
      %1273 = sbr.rel (0) target = $region57
    $region56: #{lstm_forward.1} parent=1 // pred_region
      _
    $region57: #{lstm_forward.1} parent=1 // pred_fallthru
      _
    %1274 = vsyncpa [#allocation3], 1

</llo_original>
